<compile_context>
chip_gen: v7x
topology: tpu7x:2x2x1
jax: 0.10.0
libtpu: 0.0.40
codegen_flags: <defaults>
</compile_context>

<pallas_src>
import math
import functools

import jax
import jax.numpy as jnp
from jax.experimental import pallas as pl
from jax.experimental.pallas import tpu as pltpu


_NEG_INF = -1e30


def _round_up(x, m):
    return ((x + m - 1) // m) * m


def _sdpa_kernel(q_ref, k_ref, v_ref, *out_refs, scale, sk_real, sk_pad,
                 approx_recip, return_attn):
    # q_ref: [HB, TQ, dk], k_ref: [HB, dk, Skp], v_ref: [HB, Skp, dvp]
    ctx_ref = out_refs[0]
    attn_ref = out_refs[1] if return_attn else None

    q = q_ref[...]
    k = k_ref[...]
    v = v_ref[...]

    # Fold 1/sqrt(d_k) into q: Sq*dk multiplies instead of Sq*Sk.  (Adds one
    # extra low-precision rounding of q vs. scaling the f32 scores; negligible.)
    qs = (q.astype(jnp.float32) * scale).astype(q.dtype)

    # scores = q @ k, batched over the head-block dim, f32 accumulate (MXU).
    scores = jnp.einsum('hqd,hdk->hqk', qs, k,
                        preferred_element_type=jnp.float32)

    # Mask padded key columns with a tiny (1,1,Skp) additive bias: one VPU add
    # over the full tile instead of iota + compare + select.
    if sk_pad != sk_real:
        col = jax.lax.broadcasted_iota(jnp.int32, (1, sk_pad), 1)
        bias = jnp.where(col < sk_real, 0.0, _NEG_INF).astype(jnp.float32)
        scores = scores + bias[None]

    # Numerically stable softmax over keys (f32 math).
    m = jnp.max(scores, axis=-1, keepdims=True)
    e = jnp.exp(scores - m)
    denom = jnp.sum(e, axis=-1, keepdims=True)
    # EUP approximate reciprocal is effectively free (separate issue slot); the
    # f32 path keeps the exact reciprocal.  NOTE: with approx=True the bf16
    # attn rows may not sum to exactly 1 (~1e-3 relative error).
    attn = e * pl.reciprocal(denom, approx=approx_recip)

    # Single cast to the compute dtype, reused for the matmul AND the store.
    attn_lo = attn.astype(v.dtype)

    # context = attn @ v (MXU, f32 accumulate).
    ctx = jnp.einsum('hqk,hkd->hqd', attn_lo, v,
                     preferred_element_type=jnp.float32)

    ctx_ref[...] = ctx.astype(ctx_ref.dtype)
    if attn_ref is not None:
        if attn_ref.dtype == attn_lo.dtype:
            attn_ref[...] = attn_lo
        else:
            attn_ref[...] = attn.astype(attn_ref.dtype)


def scaled_dot_product_attention(q, k, v, *, d_k=None, return_attn=True):
    """q: [B,H,Sq,dk], k: [B,H,dk,Sk], v: [B,H,Sk,dv].

    Returns (context, attn) when return_attn else context only.
    """
    B, H, Sq, dk = q.shape
    Sk = k.shape[-1]
    dv = v.shape[-1]
    if d_k is None:
        d_k = dk
    scale = 1.0 / math.sqrt(d_k)

    out_dtype = q.dtype            # attn & context emitted in the input dtype
    BH = B * H
    itemsize = jnp.dtype(out_dtype).itemsize

    # ---- lane-dense padding of the last (lane) dims to multiples of 128 ----
    Skp = _round_up(Sk, 128)
    dvp = _round_up(dv, 128)

    # ---- generation-aware VMEM budget (v5e/v6e: 128 MiB, v7x: 64 MiB) ------
    try:
        vmem_cap = int(pltpu.get_tpu_info().vmem_capacity_bytes)
    except Exception:
        vmem_cap = 64 * 1024 * 1024         # conservative (v7x-sized) default
    budget = (vmem_cap * 7) // 10           # headroom for compiler internals

    have_buffered = hasattr(pl, "Buffered")
    kv_buf_opt = 1 if have_buffered else 2  # K/V single-buffered if possible

    def _vmem_bytes(hb, tq, kv_buf):
        io = 2 * hb * tq * dk * itemsize            # q (double-buffered)
        io += kv_buf * hb * dk * Skp * itemsize     # k
        io += kv_buf * hb * Skp * dvp * itemsize    # v
        io += 2 * hb * tq * dvp * itemsize          # ctx out
        if return_attn:
            io += 2 * hb * tq * Skp * itemsize      # attn out
        # f32 in-kernel temporaries: scores, exp, attn + ctx accumulator.
        tmp = 3 * hb * tq * Skp * 4 + hb * tq * dvp * 4
        return io + tmp

    # ---- choose TQ first (longer LHS stream beats more heads for dk~16) ----
    align = 16 if itemsize == 2 else 8      # bf16 packs (16,128) per vreg
    TQ = min(512, _round_up(Sq, align))
    while _vmem_bytes(1, TQ, kv_buf_opt) > budget and TQ > align:
        TQ = max(align, _round_up(TQ // 2, align))
    Sqp = _round_up(Sq, TQ)

    # ---- then batch several heads per grid step under the same budget ------
    HB = 1
    for cand in range(min(BH, 8), 1, -1):
        if BH % cand == 0 and _vmem_bytes(cand, TQ, kv_buf_opt) <= budget:
            HB = cand
            break

    # ---- keep >=2 grid points so v7x's two TensorCores both get work -------
    if (BH // HB) * (Sqp // TQ) < 2:
        if BH >= 2:
            for cand in range(BH // 2, 0, -1):
                if BH % cand == 0:
                    HB = cand
                    break
        elif Sq > align:
            half = _round_up((Sq + 1) // 2, align)
            if half < TQ:
                TQ = half
                Sqp = _round_up(Sq, TQ)

    # vmem_limit sized as if K/V were still double-buffered (extra headroom in
    # case Buffered(1) is ignored by this JAX version).
    est = _vmem_bytes(HB, TQ, 2)
    vmem_limit = int(min((vmem_cap * 7) // 8,
                         max(32 * 1024 * 1024, (est * 13) // 10)))

    # ---- pad inputs (zeros; padded key columns are masked in-kernel) --------
    qf = q.reshape(BH, Sq, dk)
    kf = k.reshape(BH, dk, Sk)
    vf = v.reshape(BH, Sk, dv)
    if Sqp != Sq:
        qf = jnp.pad(qf, ((0, 0), (0, Sqp - Sq), (0, 0)))
    if Skp != Sk:
        kf = jnp.pad(kf, ((0, 0), (0, 0), (0, Skp - Sk)))
        vf = jnp.pad(vf, ((0, 0), (0, Skp - Sk), (0, 0)))
    if dvp != dv:
        vf = jnp.pad(vf, ((0, 0), (0, 0), (0, dvp - dv)))

    kernel = functools.partial(
        _sdpa_kernel, scale=scale, sk_real=Sk, sk_pad=Skp,
        approx_recip=(out_dtype != jnp.float32), return_attn=return_attn)

    grid = (BH // HB, Sqp // TQ)

    out_shapes = [jax.ShapeDtypeStruct((BH, Sqp, dvp), out_dtype)]
    out_specs = [pl.BlockSpec((HB, TQ, dvp), lambda b, qi: (b, qi, 0))]
    if return_attn:
        out_shapes.append(jax.ShapeDtypeStruct((BH, Sqp, Skp), out_dtype))
        out_specs.append(pl.BlockSpec((HB, TQ, Skp), lambda b, qi: (b, qi, 0)))

    def _build(use_buffered):
        kv_kwargs = ({"pipeline_mode": pl.Buffered(1)}
                     if (use_buffered and have_buffered) else {})
        in_specs = [
            pl.BlockSpec((HB, TQ, dk), lambda b, qi: (b, qi, 0)),
            # K/V block index only changes with the outer grid axis ->
            # single-buffer them and spend the VMEM on bigger TQ/HB instead.
            pl.BlockSpec((HB, dk, Skp), lambda b, qi: (b, 0, 0), **kv_kwargs),
            pl.BlockSpec((HB, Skp, dvp), lambda b, qi: (b, 0, 0), **kv_kwargs),
        ]
        return pl.pallas_call(
            kernel,
            out_shape=tuple(out_shapes),
            grid_spec=pltpu.PrefetchScalarGridSpec(
                num_scalar_prefetch=0,
                grid=grid,
                in_specs=in_specs,
                out_specs=tuple(out_specs),
            ),
            compiler_params=pltpu.CompilerParams(
                dimension_semantics=("parallel", "parallel"),
                vmem_limit_bytes=vmem_limit),
        )

    try:
        outs = _build(True)(qf, kf, vf)
    except Exception:
        # Fallback if Buffered(1) pipelining is unsupported in this JAX build.
        outs = _build(False)(qf, kf, vf)

    ctx = outs[0][:, :Sq, :dv].reshape(B, H, Sq, dv)
    if not return_attn:
        return ctx
    attn = outs[1][:, :Sq, :Sk].reshape(B, H, Sq, Sk)
    return ctx, attn
    # TODO(synk): attn_mask / prev / res_attention branches of the PyTorch
    # module are not exercised by the default call path (all None / False).


def _reference(q, k, v, d_k):
    scores = jnp.einsum("bhqd,bhdk->bhqk",
                        q.astype(jnp.float32), k.astype(jnp.float32))
    scores = scores / math.sqrt(d_k)
    attn = jax.nn.softmax(scores, axis=-1)
    ctx = jnp.einsum("bhqk,bhkd->bhqd", attn, v.astype(jnp.float32))
    return ctx, attn


if __name__ == "__main__":
    B, H, Sq, Sk, d_k, d_v = 2, 2, 8, 8, 16, 16
    key = jax.random.PRNGKey(0)
    kq, kk, kv = jax.random.split(key, 3)
    q = jax.random.normal(kq, (B, H, Sq, d_k), dtype=jnp.float32)
    k = jax.random.normal(kk, (B, H, d_k, Sk), dtype=jnp.float32)
    v = jax.random.normal(kv, (B, H, Sk, d_v), dtype=jnp.float32)

    ref_ctx, ref_attn = _reference(q, k, v, d_k)

    # f32 path (exact reciprocal; exercises Sk/dv padding + key-column bias).
    ctx, attn = scaled_dot_product_attention(q, k, v, d_k=d_k)
    jax.block_until_ready((ctx, attn))
    assert jnp.allclose(ctx, ref_ctx, atol=2e-3, rtol=2e-3), "context mismatch"
    assert jnp.allclose(attn, ref_attn, atol=2e-3, rtol=2e-3), "attn mismatch"

    # bf16 path (bf16 MXU inputs, bf16 attn writeback, approx reciprocal).
    qb, kb, vb = (x.astype(jnp.bfloat16) for x in (q, k, v))
    ctx_b, attn_b = scaled_dot_product_attention(qb, kb, vb, d_k=d_k)
    jax.block_until_ready((ctx_b, attn_b))
    assert ctx_b.dtype == jnp.bfloat16 and attn_b.dtype == jnp.bfloat16
    assert jnp.allclose(ctx_b.astype(jnp.float32), ref_ctx,
                        atol=5e-2, rtol=5e-2), "bf16 context mismatch"
    assert jnp.allclose(attn_b.astype(jnp.float32), ref_attn,
                        atol=5e-2, rtol=5e-2), "bf16 attn mismatch"

    # Context-only path (drops the dominant Sq*Sk attn HBM writeback).
    ctx_only = scaled_dot_product_attention(q, k, v, d_k=d_k,
                                            return_attn=False)
    jax.block_until_ready(ctx_only)
    assert jnp.allclose(ctx_only, ref_ctx, atol=2e-3, rtol=2e-3), \
        "ctx-only mismatch"

    print("KERNEL_OK")
</pallas_src>

<mosaic_0001>
module attributes {stable_mosaic.version = 11 : i64} {
  func.func @_sdpa_kernel(%arg0: i32, %arg1: i32, %arg2: memref<2x8x16xf32, #tpu.memory_space<vmem>>, %arg3: memref<2x16x128xf32, #tpu.memory_space<vmem>>, %arg4: memref<2x128x128xf32, #tpu.memory_space<vmem>>, %arg5: memref<2x8x128xf32, #tpu.memory_space<vmem>>, %arg6: memref<2x8x128xf32, #tpu.memory_space<vmem>>) attributes {dimension_semantics = [#tpu.dimension_semantics<parallel>, #tpu.dimension_semantics<parallel>], iteration_bounds = array<i64: 2, 1>, scalar_prefetch = 0 : i64, scratch_operands = 0 : i64, tpu.core_type = #tpu.core_type<tc>, window_params = [{transform_indices = @transform_0, window_bounds = array<i64: 2, 8, 16>}, {pipeline_mode = #tpu.pipeline_mode<synchronous>, transform_indices = @transform_1, window_bounds = array<i64: 2, 16, 128>}, {pipeline_mode = #tpu.pipeline_mode<synchronous>, transform_indices = @transform_2, window_bounds = array<i64: 2, 128, 128>}, {transform_indices = @transform_3, window_bounds = array<i64: 2, 8, 128>}, {transform_indices = @transform_4, window_bounds = array<i64: 2, 8, 128>}]} {
    %c0 = arith.constant 0 : index
    %c0_0 = arith.constant 0 : index
    %c0_1 = arith.constant 0 : index
    %0 = vector.load %arg2[%c0, %c0_0, %c0_1] : memref<2x8x16xf32, #tpu.memory_space<vmem>>, vector<2x8x16xf32>
    %c0_2 = arith.constant 0 : index
    %c0_3 = arith.constant 0 : index
    %c0_4 = arith.constant 0 : index
    %1 = vector.load %arg3[%c0_2, %c0_3, %c0_4] : memref<2x16x128xf32, #tpu.memory_space<vmem>>, vector<2x16x128xf32>
    %c0_5 = arith.constant 0 : index
    %c0_6 = arith.constant 0 : index
    %c0_7 = arith.constant 0 : index
    %2 = vector.load %arg4[%c0_5, %c0_6, %c0_7] : memref<2x128x128xf32, #tpu.memory_space<vmem>>, vector<2x128x128xf32>
    %cst = arith.constant 2.500000e-01 : f32
    %3 = vector.broadcast %cst : f32 to vector<2x8x16xf32>
    %4 = arith.mulf %0, %3 : vector<2x8x16xf32>
    "tpu.trace_start"() <{level = 10 : i32, message = "hqd,hdk->hqk"}> : () -> ()
    %cst_8 = arith.constant dense<0.000000e+00> : vector<2x8x128xf32>
    %5 = tpu.matmul %4, %1, %cst_8 {dimension_numbers = #tpu.dot_dimension_numbers<[2], [1], [1], [2], [0, 0, 0, 1, 1, 2], [0], [0]>} : vector<2x8x16xf32>, vector<2x16x128xf32>, vector<2x8x128xf32> -> vector<2x8x128xf32>
    "tpu.trace_stop"() : () -> ()
    %6 = tpu.iota {dimensions = array<i32: 1>} : vector<1x128xi32>
    %c8_i32 = arith.constant 8 : i32
    %7 = vector.broadcast %c8_i32 : i32 to vector<1x128xi32>
    %8 = arith.cmpi slt, %6, %7 : vector<1x128xi32>
    %cst_9 = arith.constant 0.000000e+00 : f32
    %cst_10 = arith.constant -1.000000e+30 : f32
    %9 = vector.broadcast %cst_9 : f32 to vector<1x128xf32>
    %10 = vector.broadcast %cst_10 : f32 to vector<1x128xf32>
    %11 = arith.select %8, %9, %10 : vector<1x128xi1>, vector<1x128xf32>
    %12 = vector.shape_cast %11 : vector<1x128xf32> to vector<1x1x128xf32>
    %13 = vector.broadcast %12 : vector<1x1x128xf32> to vector<2x8x128xf32>
    %14 = arith.addf %5, %13 : vector<2x8x128xf32>
    %cst_11 = arith.constant dense<0xFF800000> : vector<2x8xf32>
    %15 = vector.multi_reduction <maximumf>, %14, %cst_11 [2] : vector<2x8x128xf32> to vector<2x8xf32>
    %16 = vector.shape_cast %15 : vector<2x8xf32> to vector<2x8x1xf32>
    %17 = vector.broadcast %16 : vector<2x8x1xf32> to vector<2x8x128xf32>
    %18 = arith.subf %14, %17 : vector<2x8x128xf32>
    %19 = math.exp %18 : vector<2x8x128xf32>
    %cst_12 = arith.constant dense<0.000000e+00> : vector<2x8xf32>
    %20 = vector.multi_reduction <add>, %19, %cst_12 [2] : vector<2x8x128xf32> to vector<2x8xf32>
    %21 = vector.shape_cast %20 : vector<2x8xf32> to vector<2x8x1xf32>
    %22 = tpu.reciprocal %21 : vector<2x8x1xf32> -> vector<2x8x1xf32>
    %23 = vector.broadcast %22 : vector<2x8x1xf32> to vector<2x8x128xf32>
    %24 = arith.mulf %19, %23 : vector<2x8x128xf32>
    "tpu.trace_start"() <{level = 10 : i32, message = "hqk,hkd->hqd"}> : () -> ()
    %cst_13 = arith.constant dense<0.000000e+00> : vector<2x8x128xf32>
    %25 = tpu.matmul %24, %2, %cst_13 {dimension_numbers = #tpu.dot_dimension_numbers<[2], [1], [1], [2], [0, 0, 0, 1, 1, 2], [0], [0]>} : vector<2x8x128xf32>, vector<2x128x128xf32>, vector<2x8x128xf32> -> vector<2x8x128xf32>
    "tpu.trace_stop"() : () -> ()
    %c0_14 = arith.constant 0 : index
    %c0_15 = arith.constant 0 : index
    %c0_16 = arith.constant 0 : index
    %26 = vector.load %arg5[%c0_14, %c0_15, %c0_16] : memref<2x8x128xf32, #tpu.memory_space<vmem>>, vector<2x8x128xf32>
    tpu.vector_store %arg5[%c0_14, %c0_15, %c0_16], %25 {strides = array<i32>} : memref<2x8x128xf32, #tpu.memory_space<vmem>>, vector<2x8x128xf32>,
    %c0_17 = arith.constant 0 : index
    %c0_18 = arith.constant 0 : index
    %c0_19 = arith.constant 0 : index
    %27 = vector.load %arg6[%c0_17, %c0_18, %c0_19] : memref<2x8x128xf32, #tpu.memory_space<vmem>>, vector<2x8x128xf32>
    tpu.vector_store %arg6[%c0_17, %c0_18, %c0_19], %24 {strides = array<i32>} : memref<2x8x128xf32, #tpu.memory_space<vmem>>, vector<2x8x128xf32>,
    return
  }
  func.func @transform_0(%arg0: i32, %arg1: i32) -> (i32, i32, i32) {
    %c0_i32 = arith.constant 0 : i32
    %c0_i32_0 = arith.constant 0 : i32
    return %arg0, %arg1, %c0_i32 : i32, i32, i32
  }
  func.func @transform_1(%arg0: i32, %arg1: i32) -> (i32, i32, i32) {
    %c0_i32 = arith.constant 0 : i32
    %c0_i32_0 = arith.constant 0 : i32
    %c0_i32_1 = arith.constant 0 : i32
    return %arg0, %c0_i32, %c0_i32_0 : i32, i32, i32
  }
  func.func @transform_2(%arg0: i32, %arg1: i32) -> (i32, i32, i32) {
    %c0_i32 = arith.constant 0 : i32
    %c0_i32_0 = arith.constant 0 : i32
    %c0_i32_1 = arith.constant 0 : i32
    return %arg0, %c0_i32, %c0_i32_0 : i32, i32, i32
  }
  func.func @transform_3(%arg0: i32, %arg1: i32) -> (i32, i32, i32) {
    %c0_i32 = arith.constant 0 : i32
    %c0_i32_0 = arith.constant 0 : i32
    return %arg0, %arg1, %c0_i32 : i32, i32, i32
  }
  func.func @transform_4(%arg0: i32, %arg1: i32) -> (i32, i32, i32) {
    %c0_i32 = arith.constant 0 : i32
    %c0_i32_0 = arith.constant 0 : i32
    return %arg0, %arg1, %c0_i32 : i32, i32, i32
  }
}

module attributes {stable_mosaic.version = 11 : i64} {
  func.func @_sdpa_kernel(%arg0: i32, %arg1: i32, %arg2: memref<2x8x16xf32, #tpu.memory_space<vmem>>, %arg3: memref<2x16x128xf32, #tpu.memory_space<vmem>>, %arg4: memref<2x128x128xf32, #tpu.memory_space<vmem>>, %arg5: memref<2x8x128xf32, #tpu.memory_space<vmem>>, %arg6: memref<2x8x128xf32, #tpu.memory_space<vmem>>) attributes {dimension_semantics = [#tpu.dimension_semantics<parallel>, #tpu.dimension_semantics<parallel>], iteration_bounds = array<i64: 2, 1>, scalar_prefetch = 0 : i64, scratch_operands = 0 : i64, tpu.core_type = #tpu.core_type<tc>, window_params = [{transform_indices = @transform_0, window_bounds = array<i64: 2, 8, 16>}, {transform_indices = @transform_1, window_bounds = array<i64: 2, 16, 128>}, {transform_indices = @transform_2, window_bounds = array<i64: 2, 128, 128>}, {transform_indices = @transform_3, window_bounds = array<i64: 2, 8, 128>}, {transform_indices = @transform_4, window_bounds = array<i64: 2, 8, 128>}]} {
    %c0 = arith.constant 0 : index
    %c0_0 = arith.constant 0 : index
    %c0_1 = arith.constant 0 : index
    %0 = vector.load %arg2[%c0, %c0_0, %c0_1] : memref<2x8x16xf32, #tpu.memory_space<vmem>>, vector<2x8x16xf32>
    %c0_2 = arith.constant 0 : index
    %c0_3 = arith.constant 0 : index
    %c0_4 = arith.constant 0 : index
    %1 = vector.load %arg3[%c0_2, %c0_3, %c0_4] : memref<2x16x128xf32, #tpu.memory_space<vmem>>, vector<2x16x128xf32>
    %c0_5 = arith.constant 0 : index
    %c0_6 = arith.constant 0 : index
    %c0_7 = arith.constant 0 : index
    %2 = vector.load %arg4[%c0_5, %c0_6, %c0_7] : memref<2x128x128xf32, #tpu.memory_space<vmem>>, vector<2x128x128xf32>
    %cst = arith.constant 2.500000e-01 : f32
    %3 = vector.broadcast %cst : f32 to vector<2x8x16xf32>
    %4 = arith.mulf %0, %3 : vector<2x8x16xf32>
    "tpu.trace_start"() <{level = 10 : i32, message = "hqd,hdk->hqk"}> : () -> ()
    %cst_8 = arith.constant dense<0.000000e+00> : vector<2x8x128xf32>
    %5 = tpu.matmul %4, %1, %cst_8 {dimension_numbers = #tpu.dot_dimension_numbers<[2], [1], [1], [2], [0, 0, 0, 1, 1, 2], [0], [0]>} : vector<2x8x16xf32>, vector<2x16x128xf32>, vector<2x8x128xf32> -> vector<2x8x128xf32>
    "tpu.trace_stop"() : () -> ()
    %6 = tpu.iota {dimensions = array<i32: 1>} : vector<1x128xi32>
    %c8_i32 = arith.constant 8 : i32
    %7 = vector.broadcast %c8_i32 : i32 to vector<1x128xi32>
    %8 = arith.cmpi slt, %6, %7 : vector<1x128xi32>
    %cst_9 = arith.constant 0.000000e+00 : f32
    %cst_10 = arith.constant -1.000000e+30 : f32
    %9 = vector.broadcast %cst_9 : f32 to vector<1x128xf32>
    %10 = vector.broadcast %cst_10 : f32 to vector<1x128xf32>
    %11 = arith.select %8, %9, %10 : vector<1x128xi1>, vector<1x128xf32>
    %12 = vector.shape_cast %11 : vector<1x128xf32> to vector<1x1x128xf32>
    %13 = vector.broadcast %12 : vector<1x1x128xf32> to vector<2x8x128xf32>
    %14 = arith.addf %5, %13 : vector<2x8x128xf32>
    %cst_11 = arith.constant dense<0xFF800000> : vector<2x8xf32>
    %15 = vector.multi_reduction <maximumf>, %14, %cst_11 [2] : vector<2x8x128xf32> to vector<2x8xf32>
    %16 = vector.shape_cast %15 : vector<2x8xf32> to vector<2x8x1xf32>
    %17 = vector.broadcast %16 : vector<2x8x1xf32> to vector<2x8x128xf32>
    %18 = arith.subf %14, %17 : vector<2x8x128xf32>
    %19 = math.exp %18 : vector<2x8x128xf32>
    %cst_12 = arith.constant dense<0.000000e+00> : vector<2x8xf32>
    %20 = vector.multi_reduction <add>, %19, %cst_12 [2] : vector<2x8x128xf32> to vector<2x8xf32>
    %21 = vector.shape_cast %20 : vector<2x8xf32> to vector<2x8x1xf32>
    %22 = tpu.reciprocal %21 : vector<2x8x1xf32> -> vector<2x8x1xf32>
    %23 = vector.broadcast %22 : vector<2x8x1xf32> to vector<2x8x128xf32>
    %24 = arith.mulf %19, %23 : vector<2x8x128xf32>
    "tpu.trace_start"() <{level = 10 : i32, message = "hqk,hkd->hqd"}> : () -> ()
    %cst_13 = arith.constant dense<0.000000e+00> : vector<2x8x128xf32>
    %25 = tpu.matmul %24, %2, %cst_13 {dimension_numbers = #tpu.dot_dimension_numbers<[2], [1], [1], [2], [0, 0, 0, 1, 1, 2], [0], [0]>} : vector<2x8x128xf32>, vector<2x128x128xf32>, vector<2x8x128xf32> -> vector<2x8x128xf32>
    "tpu.trace_stop"() : () -> ()
    %c0_14 = arith.constant 0 : index
    %c0_15 = arith.constant 0 : index
    %c0_16 = arith.constant 0 : index
    %26 = vector.load %arg5[%c0_14, %c0_15, %c0_16] : memref<2x8x128xf32, #tpu.memory_space<vmem>>, vector<2x8x128xf32>
    tpu.vector_store %arg5[%c0_14, %c0_15, %c0_16], %25 {strides = array<i32>} : memref<2x8x128xf32, #tpu.memory_space<vmem>>, vector<2x8x128xf32>,
    %c0_17 = arith.constant 0 : index
    %c0_18 = arith.constant 0 : index
    %c0_19 = arith.constant 0 : index
    %27 = vector.load %arg6[%c0_17, %c0_18, %c0_19] : memref<2x8x128xf32, #tpu.memory_space<vmem>>, vector<2x8x128xf32>
    tpu.vector_store %arg6[%c0_17, %c0_18, %c0_19], %24 {strides = array<i32>} : memref<2x8x128xf32, #tpu.memory_space<vmem>>, vector<2x8x128xf32>,
    return
  }
  func.func @transform_0(%arg0: i32, %arg1: i32) -> (i32, i32, i32) {
    %c0_i32 = arith.constant 0 : i32
    %c0_i32_0 = arith.constant 0 : i32
    return %arg0, %arg1, %c0_i32 : i32, i32, i32
  }
  func.func @transform_1(%arg0: i32, %arg1: i32) -> (i32, i32, i32) {
    %c0_i32 = arith.constant 0 : i32
    %c0_i32_0 = arith.constant 0 : i32
    %c0_i32_1 = arith.constant 0 : i32
    return %arg0, %c0_i32, %c0_i32_0 : i32, i32, i32
  }
  func.func @transform_2(%arg0: i32, %arg1: i32) -> (i32, i32, i32) {
    %c0_i32 = arith.constant 0 : i32
    %c0_i32_0 = arith.constant 0 : i32
    %c0_i32_1 = arith.constant 0 : i32
    return %arg0, %c0_i32, %c0_i32_0 : i32, i32, i32
  }
  func.func @transform_3(%arg0: i32, %arg1: i32) -> (i32, i32, i32) {
    %c0_i32 = arith.constant 0 : i32
    %c0_i32_0 = arith.constant 0 : i32
    return %arg0, %arg1, %c0_i32 : i32, i32, i32
  }
  func.func @transform_4(%arg0: i32, %arg1: i32) -> (i32, i32, i32) {
    %c0_i32 = arith.constant 0 : i32
    %c0_i32_0 = arith.constant 0 : i32
    return %arg0, %arg1, %c0_i32 : i32, i32, i32
  }
}

</mosaic_0001>

<llo_original>
// kernel: tpu_custom_call.1
$region0: #{tpu_custom_call.1}
  #allocation0 [shape = 'u32[]', space=smem, size = 0x4, offset = 0x4, fixed_abs, tag = 'smem constant byte address 0x4 - core index']
  #allocation1 [shape = 'u32[144,128]{1,0:T(1,128)}', space=vmem, size = 0x12000, scoped, tag = 'internal scratch']
  %s0 = inlined_call_operand.hbm [shape: f32[4,8,16], index: 0, kind: input, shape index: {}]
  %s1 = inlined_call_operand.hbm [shape: f32[4,16,128], index: 1, kind: input, shape index: {}]
  %s2 = inlined_call_operand.hbm [shape: f32[4,128,128], index: 2, kind: input, shape index: {}]
  %s3 = inlined_call_operand.hbm [shape: f32[4,8,128], index: 3, kind: output, shape index: {0}]
  %s4 = inlined_call_operand.hbm [shape: f32[4,8,128], index: 4, kind: output, shape index: {1}]
  %5 = xla_tuple %s3, %s4
  %s6 = sld [smem:[#allocation0]]
  $region65: #{tpu_custom_call.1} parent=0
    _
  %s8 = ssub.s32 1, %s6
  %s9 = scalar_select 0, %s8, %s6
  $region1: #{tpu_custom_call.1} parent=0
    #allocation2 [shape = 'u8[16384]{0}', space=vmem, size = 0x4000, scoped, tag = 'input window, operand 0']
    #allocation3 [shape = 's32[2]{0}', space=sflag, size = 0x8, scoped, tag = 'scoped memory for tpu_custom_call.1']
    #allocation4 [shape = 's32[2]{0}', space=sflag, size = 0x8, scoped, tag = 'scoped memory for tpu_custom_call.1']
    #allocation5 [shape = 'u8[16384]{0}', space=vmem, size = 0x4000, scoped, tag = 'input window, operand 1, single buffered']
    #allocation6 [shape = 's32[1]{0}', space=sflag, size = 0x4, scoped, tag = 'scoped memory for tpu_custom_call.1']
    #allocation7 [shape = 'u8[131072]{0}', space=vmem, size = 0x20000, scoped, tag = 'input window, operand 2, single buffered']
    #allocation8 [shape = 'u8[16384]{0}', space=vmem, size = 0x4000, scoped, tag = 'output window, operand 0']
    #allocation9 [shape = 'u8[16384]{0}', space=vmem, size = 0x4000, scoped, tag = 'output window, operand 1']
    #allocation10 [shape = 's32[2]{0}', space=sflag, size = 0x8, scoped, tag = 'scoped memory for tpu_custom_call.1']
    %10 = vsyncpa [#allocation3], 0
    %s11 = scalar_lea.sflag [#allocation3], 1
    %12 = vsyncpa %s11, 0
    %13 = vsyncpa [#allocation6], 0
    %14 = vsyncpa [#allocation4], 0
    %s15 = scalar_lea.sflag [#allocation4], 1
    %16 = vsyncpa %s15, 0
    %17 = vsyncpa [#allocation10], 0
    %s18 = scalar_lea.sflag [#allocation10], 1
    %19 = vsyncpa %s18, 0
    loop: start=0, step=1, limit=4
    $region2: #{tpu_custom_call.1} parent=1 // loop_pre_header
      _
    $region3: #{tpu_custom_call.1} parent=1 // loop_header
      %s21 = sphi 0, %s25
      %p22 = scmp.ge.s32.totalorder %s21, 4
      %s28 = sphi 0, %s40
      %s29 = sphi 0, %s36
      %s30 = sphi 0, %s28
      %s31 = sphi 0, %s29
      %s32 = sphi 0, %s30
      %s33 = sphi 0, %s31
      %s45 = sphi 0, %s47
      %s48 = sphi 0, %s45
      %s49 = sphi 0, %s48
      %s65 = sphi 0, %s49
      %s71 = sphi 0, %s73
      %s74 = sphi 0, %s71
      %s75 = sphi 0, %s74
      %s91 = sphi 0, %s75
      %s97 = sphi 0, %s99
      %s100 = sphi 0, %s97
      %s101 = sphi 0, %s100
      %s117 = sphi 0, %s101
      %s125 = sphi 0, %s127
      %s128 = sphi 0, %s125
      %s129 = sphi 0, %s128
      %s145 = sphi 0, %s129
      %s153 = sphi 0, %s155
      %s156 = sphi 0, %s153
      %s157 = sphi 0, %s156
      %s173 = sphi 0, %s157
    $region4: #{tpu_custom_call.1} parent=1 // loop_header_branch
      %24 = sbr.rel (%p22) target = $region8
    $region5: #{tpu_custom_call.1} parent=1 // loop_body
      %s26 = ssub.s32 %s21, 1
      %s27 = ssub.s32 %s21, 2
      %s34 = sadd.s32 1, %s29
      %p35 = scmp.ge.s32.totalorder %s34, 1
      %s36 = scalar_select %p35, 0, %s34
      %s37 = sadd.s32 1, %s28
      %s38 = scalar_select %p35, %s37, %s28
      %p39 = scmp.ge.s32.totalorder %s38, 2
      %s40 = scalar_select %p39, 0, %s38
      %s41 = ssub.s32 %s28, %s40
      %s42 = ssub.s32 %s29, %s36
      %s43 = sor.u32 %s41, %s42
      %p44 = scmp.eq.s32.totalorder %s43, 0
      %s46 = sadd.s32 %s45, 1
      %s47 = scalar_select %p44, %s45, %s46
      %p50 = pneg %p44
      %p51 = scmp.eq.s32.totalorder %s21, 1
      %p52 = por %p50, %p51
      %p53 = scmp.ne.s32.totalorder %s45, %s48
      %p54 = scmp.eq.s32.totalorder %s21, 0
      %p55 = por %p53, %p54
      %p56 = scmp.ne.s32.totalorder %s45, %s48
      %p57 = scmp.eq.s32.totalorder %s26, 1
      %p58 = por %p56, %p57
      %p59 = scmp.ne.s32.totalorder %s48, %s49
      %p60 = scmp.eq.s32.totalorder %s26, 0
      %p61 = por %p59, %p60
      %p62 = scmp.ne.s32.totalorder %s48, %s49
      %p63 = scmp.eq.s32.totalorder %s27, 1
      %p64 = por %p62, %p63
      %p66 = scmp.ne.s32.totalorder %s49, %s65
      %p67 = scmp.eq.s32.totalorder %s27, 0
      %p68 = por %p66, %p67
      %s69 = ssub.s32 %s28, %s40
      %p70 = scmp.eq.s32.totalorder %s69, 0
      %s72 = sadd.s32 %s71, 1
      %s73 = scalar_select %p70, %s71, %s72
      %p76 = pneg %p70
      %p77 = scmp.eq.s32.totalorder %s21, 1
      %p78 = por %p76, %p77
      %p79 = scmp.ne.s32.totalorder %s71, %s74
      %p80 = scmp.eq.s32.totalorder %s21, 0
      %p81 = por %p79, %p80
      %p82 = scmp.ne.s32.totalorder %s71, %s74
      %p83 = scmp.eq.s32.totalorder %s26, 1
      %p84 = por %p82, %p83
      %p85 = scmp.ne.s32.totalorder %s74, %s75
      %p86 = scmp.eq.s32.totalorder %s26, 0
      %p87 = por %p85, %p86
      %p88 = scmp.ne.s32.totalorder %s74, %s75
      %p89 = scmp.eq.s32.totalorder %s27, 1
      %p90 = por %p88, %p89
      %p92 = scmp.ne.s32.totalorder %s75, %s91
      %p93 = scmp.eq.s32.totalorder %s27, 0
      %p94 = por %p92, %p93
      %s95 = ssub.s32 %s28, %s40
      %p96 = scmp.eq.s32.totalorder %s95, 0
      %s98 = sadd.s32 %s97, 1
      %s99 = scalar_select %p96, %s97, %s98
      %p102 = pneg %p96
      %p103 = scmp.eq.s32.totalorder %s21, 1
      %p104 = por %p102, %p103
      %p105 = scmp.ne.s32.totalorder %s97, %s100
      %p106 = scmp.eq.s32.totalorder %s21, 0
      %p107 = por %p105, %p106
      %p108 = scmp.ne.s32.totalorder %s97, %s100
      %p109 = scmp.eq.s32.totalorder %s26, 1
      %p110 = por %p108, %p109
      %p111 = scmp.ne.s32.totalorder %s100, %s101
      %p112 = scmp.eq.s32.totalorder %s26, 0
      %p113 = por %p111, %p112
      %p114 = scmp.ne.s32.totalorder %s100, %s101
      %p115 = scmp.eq.s32.totalorder %s27, 1
      %p116 = por %p114, %p115
      %p118 = scmp.ne.s32.totalorder %s101, %s117
      %p119 = scmp.eq.s32.totalorder %s27, 0
      %p120 = por %p118, %p119
      %s121 = ssub.s32 %s28, %s40
      %s122 = ssub.s32 %s29, %s36
      %s123 = sor.u32 %s121, %s122
      %p124 = scmp.eq.s32.totalorder %s123, 0
      %s126 = sadd.s32 %s125, 1
      %s127 = scalar_select %p124, %s125, %s126
      %p130 = pneg %p124
      %p131 = scmp.eq.s32.totalorder %s21, 1
      %p132 = por %p130, %p131
      %p133 = scmp.ne.s32.totalorder %s125, %s128
      %p134 = scmp.eq.s32.totalorder %s21, 0
      %p135 = por %p133, %p134
      %p136 = scmp.ne.s32.totalorder %s125, %s128
      %p137 = scmp.eq.s32.totalorder %s26, 1
      %p138 = por %p136, %p137
      %p139 = scmp.ne.s32.totalorder %s128, %s129
      %p140 = scmp.eq.s32.totalorder %s26, 0
      %p141 = por %p139, %p140
      %p142 = scmp.ne.s32.totalorder %s128, %s129
      %p143 = scmp.eq.s32.totalorder %s27, 1
      %p144 = por %p142, %p143
      %p146 = scmp.ne.s32.totalorder %s129, %s145
      %p147 = scmp.eq.s32.totalorder %s27, 0
      %p148 = por %p146, %p147
      %s149 = ssub.s32 %s28, %s40
      %s150 = ssub.s32 %s29, %s36
      %s151 = sor.u32 %s149, %s150
      %p152 = scmp.eq.s32.totalorder %s151, 0
      %s154 = sadd.s32 %s153, 1
      %s155 = scalar_select %p152, %s153, %s154
      %p158 = pneg %p152
      %p159 = scmp.eq.s32.totalorder %s21, 1
      %p160 = por %p158, %p159
      %p161 = scmp.ne.s32.totalorder %s153, %s156
      %p162 = scmp.eq.s32.totalorder %s21, 0
      %p163 = por %p161, %p162
      %p164 = scmp.ne.s32.totalorder %s153, %s156
      %p165 = scmp.eq.s32.totalorder %s26, 1
      %p166 = por %p164, %p165
      %p167 = scmp.ne.s32.totalorder %s156, %s157
      %p168 = scmp.eq.s32.totalorder %s26, 0
      %p169 = por %p167, %p168
      %p170 = scmp.ne.s32.totalorder %s156, %s157
      %p171 = scmp.eq.s32.totalorder %s27, 1
      %p172 = por %p170, %p171
      %p174 = scmp.ne.s32.totalorder %s157, %s173
      %p175 = scmp.eq.s32.totalorder %s27, 0
      %p176 = por %p174, %p175
      %p177 = scmp.le.s32.totalorder 1, %s21
      %p178 = scmp.lt.s32.totalorder %s21, 3
      %p179 = pnand %p177, %p178
      %p180 = pneg %p179
      // Predicated region
      $region9: #{tpu_custom_call.1} parent=5 // pred_check
        _
      $region10: #{tpu_custom_call.1} parent=5 // pred_check_branch
        %182 = sbr.rel (%p179) target = $region12
      $region11: #{tpu_custom_call.1} parent=5 // pred_region
        %s183 = ssub.s32 %s21, 1
        // Predicated region
        $region13: #{tpu_custom_call.1} parent=11 // pred_check
          %p184 = pneg %p87
        $region14: #{tpu_custom_call.1} parent=11 // pred_check_branch
          %186 = sbr.rel (%p184) target = $region16
        $region15: #{tpu_custom_call.1} parent=11 // pred_region
          %s187 = smul.u32 2, %s30
          %s189 = ssub.s32 512, 512
          %190 = vsyncadd [#allocation6], %s189
          %s191 = smul.addr %s187, 2
          %s192 = smul.addr %s191, 128
          %s193 = scalar_lea.hbm %s1, %s192
          %s194 = sshll.u32 [#allocation5], 4
          %s195 = int_to_ptr.vmem [resolvable:$true] %s194
          %200 = dma.hbm_to_vmem [thread:$0]  %s193, 512, %s195, [#allocation6], 128, 128, 8
        $region16: #{tpu_custom_call.1} parent=11 // pred_fallthru
          _
        // Predicated region
        $region17: #{tpu_custom_call.1} parent=11 // pred_check
          %p201 = pneg %p113
        $region18: #{tpu_custom_call.1} parent=11 // pred_check_branch
          %203 = sbr.rel (%p201) target = $region20
        $region19: #{tpu_custom_call.1} parent=11 // pred_region
          %s204 = smul.u32 2, %s30
          %s206 = ssub.s32 4096, 4096
          %207 = vsyncadd [#allocation6], %s206
          %s208 = smul.addr %s204, 16
          %s209 = smul.addr %s208, 128
          %s210 = scalar_lea.hbm %s2, %s209
          %s211 = sshll.u32 [#allocation7], 4
          %s212 = int_to_ptr.vmem [resolvable:$true] %s211
          %217 = dma.hbm_to_vmem [thread:$0]  %s210, 4096, %s212, [#allocation6], 128, 128, 8
        $region20: #{tpu_custom_call.1} parent=11 // pred_fallthru
          _
      $region12: #{tpu_custom_call.1} parent=5 // pred_fallthru
        _
      %p218 = scmp.lt.s32.totalorder %s21, 2
      // Predicated region
      $region21: #{tpu_custom_call.1} parent=5 // pred_check
        %p219 = pneg %p218
      $region22: #{tpu_custom_call.1} parent=5 // pred_check_branch
        %221 = sbr.rel (%p219) target = $region24
      $region23: #{tpu_custom_call.1} parent=5 // pred_region
        // Predicated region
        $region25: #{tpu_custom_call.1} parent=23 // pred_check
          %p222 = pneg %p55
        $region26: #{tpu_custom_call.1} parent=23 // pred_check_branch
          %224 = sbr.rel (%p222) target = $region28
        $region27: #{tpu_custom_call.1} parent=23 // pred_region
          %s225 = sand.u32 %s45, 1
          %s226 = scalar_lea.sflag [#allocation3], %s225
          %s227 = sand.u32 %s45, 1
          %s228 = smul.addr %s227, 16
          %s229 = scalar_lea.vmem [#allocation2], %s228
          %s230 = smul.u32 2, %s28
          %s232 = ssub.s32 256, 256
          %233 = vsyncadd %s226, %s232
          %s234 = sadd.s32 %s29, %s230
          %s235 = smul.addr %s234, 128
          %s236 = scalar_lea.hbm %s0, %s235
          %s237 = sshll.u32 %s229, 4
          %s238 = int_to_ptr.vmem [resolvable:$true] %s237
          %243 = dma.hbm_to_vmem [thread:$0]  %s236, 256, %s238, %s226, 128, 128, 8
        $region28: #{tpu_custom_call.1} parent=23 // pred_fallthru
          _
      $region24: #{tpu_custom_call.1} parent=5 // pred_fallthru
        _
      %p244 = scmp.le.s32.totalorder 1, %s21
      %p245 = scmp.lt.s32.totalorder %s21, 3
      %p246 = pnand %p244, %p245
      %p247 = pneg %p246
      // Predicated region
      $region29: #{tpu_custom_call.1} parent=5 // pred_check
        _
      $region30: #{tpu_custom_call.1} parent=5 // pred_check_branch
        %249 = sbr.rel (%p246) target = $region32
      $region31: #{tpu_custom_call.1} parent=5 // pred_region
        %s250 = ssub.s32 %s21, 1
        %s251 = sand.u32 %s48, 1
        %s252 = scalar_lea.sflag [#allocation3], %s251
        %s253 = sand.u32 %s48, 1
        %s254 = smul.addr %s253, 16
        %s255 = scalar_lea.vmem [#allocation2], %s254
        // Predicated region
        $region33: #{tpu_custom_call.1} parent=31 // pred_check
          %p256 = pneg %p61
        $region34: #{tpu_custom_call.1} parent=31 // pred_check_branch
          %258 = sbr.rel (%p256) target = $region36
        $region35: #{tpu_custom_call.1} parent=31 // pred_region
          %259 = dma.done %s252, 256
        $region36: #{tpu_custom_call.1} parent=31 // pred_fallthru
          _
        // Predicated region
        $region37: #{tpu_custom_call.1} parent=31 // pred_check
          %p260 = pneg %p87
        $region38: #{tpu_custom_call.1} parent=31 // pred_check_branch
          %262 = sbr.rel (%p260) target = $region40
        $region39: #{tpu_custom_call.1} parent=31 // pred_region
          %263 = dma.done [#allocation6], 512
        $region40: #{tpu_custom_call.1} parent=31 // pred_fallthru
          _
        // Predicated region
        $region41: #{tpu_custom_call.1} parent=31 // pred_check
          %p264 = pneg %p113
        $region42: #{tpu_custom_call.1} parent=31 // pred_check_branch
          %266 = sbr.rel (%p264) target = $region44
        $region43: #{tpu_custom_call.1} parent=31 // pred_region
          %267 = dma.done [#allocation6], 4096
        $region44: #{tpu_custom_call.1} parent=31 // pred_fallthru
          _
        %s268 = sand.u32 %s48, 1
        %s269 = scalar_lea.sflag [#allocation3], %s268
        %s270 = sand.u32 %s48, 1
        %s271 = smul.addr %s270, 16
        %s272 = scalar_lea.vmem [#allocation2], %s271
        %p273 = pneg %p61
        %p274 = pneg %p58
        %p275 = pneg %p87
        %p276 = pneg %p84
        %p277 = pneg %p113
        %p278 = pneg %p110
        %p279 = pneg %p141
        %p280 = pneg %p138
        %s281 = sand.u32 %s128, 1
        %s282 = scalar_lea.sflag [#allocation4], %s281
        %s283 = sand.u32 %s128, 1
        %s284 = smul.addr %s283, 16
        %s285 = scalar_lea.vmem [#allocation8], %s284
        %p286 = pneg %p169
        %p287 = pneg %p166
        %s288 = sand.u32 %s156, 1
        %s289 = scalar_lea.sflag [#allocation10], %s288
        %s290 = sand.u32 %s156, 1
        %s291 = smul.addr %s290, 16
        %s292 = scalar_lea.vmem [#allocation9], %s291
        %s293 = smul.u32 2, %s30
        %s294 = smul.u32 2, %s30
        %s295 = smul.u32 2, %s30
        %s296 = smul.u32 2, %s30
        %s297 = smul.u32 2, %s30
        %v298 = vld [vmem:[%s255] sm:$0xff]
        %v299 = vld [vmem:[%s255 + $0x8] sm:$0xff]
        %v300 = vld [vmem:[#allocation5] sm:$0xff]
        %v301 = vld [vmem:[#allocation5 + $0x8] sm:$0xff]
        %v302 = vld [vmem:[#allocation5 + $0x10] sm:$0xff]
        %v303 = vld [vmem:[#allocation5 + $0x18] sm:$0xff]
        %v304 = vld [vmem:[#allocation7] sm:$0xff]
        %v305 = vld [vmem:[#allocation7 + $0x8] sm:$0xff]
        %v306 = vld [vmem:[#allocation7 + $0x10] sm:$0xff]
        %v307 = vld [vmem:[#allocation7 + $0x18] sm:$0xff]
        %v308 = vld [vmem:[#allocation7 + $0x20] sm:$0xff]
        %v309 = vld [vmem:[#allocation7 + $0x28] sm:$0xff]
        %v310 = vld [vmem:[#allocation7 + $0x30] sm:$0xff]
        %v311 = vld [vmem:[#allocation7 + $0x38] sm:$0xff]
        %v312 = vld [vmem:[#allocation7 + $0x40] sm:$0xff]
        %v313 = vld [vmem:[#allocation7 + $0x48] sm:$0xff]
        %v314 = vld [vmem:[#allocation7 + $0x50] sm:$0xff]
        %v315 = vld [vmem:[#allocation7 + $0x58] sm:$0xff]
        %v316 = vld [vmem:[#allocation7 + $0x60] sm:$0xff]
        %v317 = vld [vmem:[#allocation7 + $0x68] sm:$0xff]
        %v318 = vld [vmem:[#allocation7 + $0x70] sm:$0xff]
        %v319 = vld [vmem:[#allocation7 + $0x78] sm:$0xff]
        %v320 = vld [vmem:[#allocation7 + $0x80] sm:$0xff]
        %v321 = vld [vmem:[#allocation7 + $0x88] sm:$0xff]
        %v322 = vld [vmem:[#allocation7 + $0x90] sm:$0xff]
        %v323 = vld [vmem:[#allocation7 + $0x98] sm:$0xff]
        %v324 = vld [vmem:[#allocation7 + $0xa0] sm:$0xff]
        %v325 = vld [vmem:[#allocation7 + $0xa8] sm:$0xff]
        %v326 = vld [vmem:[#allocation7 + $0xb0] sm:$0xff]
        %v327 = vld [vmem:[#allocation7 + $0xb8] sm:$0xff]
        %v328 = vld [vmem:[#allocation7 + $0xc0] sm:$0xff]
        %v329 = vld [vmem:[#allocation7 + $0xc8] sm:$0xff]
        %v330 = vld [vmem:[#allocation7 + $0xd0] sm:$0xff]
        %v331 = vld [vmem:[#allocation7 + $0xd8] sm:$0xff]
        %v332 = vld [vmem:[#allocation7 + $0xe0] sm:$0xff]
        %v333 = vld [vmem:[#allocation7 + $0xe8] sm:$0xff]
        %v334 = vld [vmem:[#allocation7 + $0xf0] sm:$0xff]
        %v335 = vld [vmem:[#allocation7 + $0xf8] sm:$0xff]
        %v336 = vmul.f32 %v298, 0.25
        %v337 = vmul.f32 %v299, 0.25
        %v338 = vlaneseq
        %v339 = vand.u32 %v338, 127
        %vm340 = vcmp.lt.s32.totalorder %v339, 8
        %v341 = vsel %vm340, 0.0, -1e+30
        %vm342 = vcmask 130048
        %v344 = vsel %vm342, %v336, 0
        %346 = vmatprep.subr.mxu0 0.0
        %347 = vmatpush1.msra.mxu0 %v300
        %348 = vmatprep.subr.mxu0 0.0
        %349 = vmatpush1.msra.mxu0 %v301
        %350 = vmatprep.subr.mxu0 0.0
        %351 = vmatpush1.msra.mxu0 0.0
        %352 = vmatprep.subr.mxu0 0.0
        %353 = vmatpush1.msra.mxu0 0.0
        %354 = vmatprep.subr.mxu0 0.0
        %355 = vmatpush1.msra.mxu0 0.0
        %356 = vmatprep.subr.mxu0 0.0
        %357 = vmatpush1.msra.mxu0 0.0
        %358 = vmatprep.subr.mxu0 0.0
        %359 = vmatpush1.msra.mxu0 0.0
        %360 = vmatprep.subr.mxu0 0.0
        %361 = vmatpush1.msra.mxu0 0.0
        %362 = vmatprep.subr.mxu0 0.0
        %363 = vmatpush1.msra.mxu0 0.0
        %364 = vmatprep.subr.mxu0 0.0
        %365 = vmatpush1.msra.mxu0 0.0
        %366 = vmatprep.subr.mxu0 0.0
        %367 = vmatpush1.msra.mxu0 0.0
        %368 = vmatprep.subr.mxu0 0.0
        %369 = vmatpush1.msra.mxu0 0.0
        %370 = vmatprep.subr.mxu0 0.0
        %371 = vmatpush1.msra.mxu0 0.0
        %372 = vmatprep.subr.mxu0 0.0
        %373 = vmatpush1.msra.mxu0 0.0
        %374 = vmatprep.subr.mxu0 0.0
        %375 = vmatpush1.msra.mxu0 0.0
        %376 = vmatprep.subr.mxu0 0.0
        %377 = vmatpush1.msra.mxu0 0.0
        %378 = vmatprep.subr.mxu0 0.0
        %379 = vmatpush1.msra.mxu0 0.0
        %380 = vmatprep.subr.mxu0 0.0
        %381 = vmatpush1.msra.mxu0 0.0
        %382 = vmatprep.subr.mxu0 0.0
        %383 = vmatpush1.msra.mxu0 0.0
        %384 = vmatprep.subr.mxu0 0.0
        %385 = vmatpush1.msra.mxu0 0.0
        %386 = vmatprep.subr.mxu0 0.0
        %387 = vmatpush1.msra.mxu0 0.0
        %388 = vmatprep.subr.mxu0 0.0
        %389 = vmatpush1.msra.mxu0 0.0
        %390 = vmatprep.subr.mxu0 0.0
        %391 = vmatpush1.msra.mxu0 0.0
        %392 = vmatprep.subr.mxu0 0.0
        %393 = vmatpush1.msra.mxu0 0.0
        %394 = vmatprep.subr.mxu0 0.0
        %395 = vmatpush1.msra.mxu0 0.0
        %396 = vmatprep.subr.mxu0 0.0
        %397 = vmatpush1.msra.mxu0 0.0
        %398 = vmatprep.subr.mxu0 0.0
        %399 = vmatpush1.msra.mxu0 0.0
        %400 = vmatprep.subr.mxu0 0.0
        %401 = vmatpush1.msra.mxu0 0.0
        %402 = vmatprep.subr.mxu0 0.0
        %403 = vmatpush1.msra.mxu0 0.0
        %404 = vmatprep.subr.mxu0 0.0
        %405 = vmatpush1.msra.mxu0 0.0
        %406 = vmatprep.subr.mxu0 0.0
        %407 = vmatpush1.msra.mxu0 0.0
        %408 = vmatprep.subr.mxu0 0.0
        %409 = vmatpush1.msra.mxu0 0.0
        %410 = vmatprep.mubr.f32.mxu0 0.0
        %411 = vmatmul.mubr.f32.gmra.mrb[0].mxu0 %v344
        %v412 = vpop.f32.mrb[0].mxu0
        %v413 = vadd.f32 %v341, %v412
        %v414 = vpop.f32.mrb[0].mxu0
        %415 = vdwg.mxu0
        %v417 = vsel %vm342, %v337, 0
        %419 = vmatprep.subr.mxu0 0.0
        %420 = vmatpush1.msra.mxu0 %v302
        %421 = vmatprep.subr.mxu0 0.0
        %422 = vmatpush1.msra.mxu0 %v303
        %423 = vmatprep.subr.mxu0 0.0
        %424 = vmatpush1.msra.mxu0 0.0
        %425 = vmatprep.subr.mxu0 0.0
        %426 = vmatpush1.msra.mxu0 0.0
        %427 = vmatprep.subr.mxu0 0.0
        %428 = vmatpush1.msra.mxu0 0.0
        %429 = vmatprep.subr.mxu0 0.0
        %430 = vmatpush1.msra.mxu0 0.0
        %431 = vmatprep.subr.mxu0 0.0
        %432 = vmatpush1.msra.mxu0 0.0
        %433 = vmatprep.subr.mxu0 0.0
        %434 = vmatpush1.msra.mxu0 0.0
        %435 = vmatprep.subr.mxu0 0.0
        %436 = vmatpush1.msra.mxu0 0.0
        %437 = vmatprep.subr.mxu0 0.0
        %438 = vmatpush1.msra.mxu0 0.0
        %439 = vmatprep.subr.mxu0 0.0
        %440 = vmatpush1.msra.mxu0 0.0
        %441 = vmatprep.subr.mxu0 0.0
        %442 = vmatpush1.msra.mxu0 0.0
        %443 = vmatprep.subr.mxu0 0.0
        %444 = vmatpush1.msra.mxu0 0.0
        %445 = vmatprep.subr.mxu0 0.0
        %446 = vmatpush1.msra.mxu0 0.0
        %447 = vmatprep.subr.mxu0 0.0
        %448 = vmatpush1.msra.mxu0 0.0
        %449 = vmatprep.subr.mxu0 0.0
        %450 = vmatpush1.msra.mxu0 0.0
        %451 = vmatprep.subr.mxu0 0.0
        %452 = vmatpush1.msra.mxu0 0.0
        %453 = vmatprep.subr.mxu0 0.0
        %454 = vmatpush1.msra.mxu0 0.0
        %455 = vmatprep.subr.mxu0 0.0
        %456 = vmatpush1.msra.mxu0 0.0
        %457 = vmatprep.subr.mxu0 0.0
        %458 = vmatpush1.msra.mxu0 0.0
        %459 = vmatprep.subr.mxu0 0.0
        %460 = vmatpush1.msra.mxu0 0.0
        %461 = vmatprep.subr.mxu0 0.0
        %462 = vmatpush1.msra.mxu0 0.0
        %463 = vmatprep.subr.mxu0 0.0
        %464 = vmatpush1.msra.mxu0 0.0
        %465 = vmatprep.subr.mxu0 0.0
        %466 = vmatpush1.msra.mxu0 0.0
        %467 = vmatprep.subr.mxu0 0.0
        %468 = vmatpush1.msra.mxu0 0.0
        %469 = vmatprep.subr.mxu0 0.0
        %470 = vmatpush1.msra.mxu0 0.0
        %471 = vmatprep.subr.mxu0 0.0
        %472 = vmatpush1.msra.mxu0 0.0
        %473 = vmatprep.subr.mxu0 0.0
        %474 = vmatpush1.msra.mxu0 0.0
        %475 = vmatprep.subr.mxu0 0.0
        %476 = vmatpush1.msra.mxu0 0.0
        %477 = vmatprep.subr.mxu0 0.0
        %478 = vmatpush1.msra.mxu0 0.0
        %479 = vmatprep.subr.mxu0 0.0
        %480 = vmatpush1.msra.mxu0 0.0
        %481 = vmatprep.subr.mxu0 0.0
        %482 = vmatpush1.msra.mxu0 0.0
        %483 = vmatprep.mubr.f32.mxu0 0.0
        %484 = vmatmul.mubr.f32.gmra.mrb[0].mxu0 %v417
        %v485 = vpop.f32.mrb[0].mxu0
        %v486 = vadd.f32 %v341, %v485
        %v487 = vpop.f32.mrb[0].mxu0
        %488 = vdwg.mxu0
        %489 = vmax.xlane.f32.xlu0 %v413
        %v490 = vpop.xlane.xlu0 %489
        %491 = vmax.xlane.f32.xlu0 %v486
        %v492 = vpop.xlane.xlu0 %491
        %v493 = vsub.f32 %v413, %v490
        %v494 = vsub.f32 %v486, %v492
        %v495 = vmul.f32 %v493, 1.442695
        %v496 = vpow.pop %v495
        %v497 = vmul.f32 %v494, 1.442695
        %v498 = vpow.pop %v497
        %499 = vadd.xlane.f32.xlu0 %v496
        %v500 = vpop.xlane.xlu0 %499
        %501 = vadd.xlane.f32.xlu0 %v498
        %v502 = vpop.xlane.xlu0 %501
        %v503 = vrcp.pop %v500
        %v504 = vrcp.pop %v502
        %v505 = vmul.f32 %v496, %v503
        %v506 = vmul.f32 %v498, %v504
        %507 = vmatprep.subr.mxu0 0.0
        %508 = vmatpush1.msra.mxu0 %v304
        %509 = vmatprep.subr.mxu0 0.0
        %510 = vmatpush1.msra.mxu0 %v305
        %511 = vmatprep.subr.mxu0 0.0
        %512 = vmatpush1.msra.mxu0 %v306
        %513 = vmatprep.subr.mxu0 0.0
        %514 = vmatpush1.msra.mxu0 %v307
        %515 = vmatprep.subr.mxu0 0.0
        %516 = vmatpush1.msra.mxu0 %v308
        %517 = vmatprep.subr.mxu0 0.0
        %518 = vmatpush1.msra.mxu0 %v309
        %519 = vmatprep.subr.mxu0 0.0
        %520 = vmatpush1.msra.mxu0 %v310
        %521 = vmatprep.subr.mxu0 0.0
        %522 = vmatpush1.msra.mxu0 %v311
        %523 = vmatprep.subr.mxu0 0.0
        %524 = vmatpush1.msra.mxu0 %v312
        %525 = vmatprep.subr.mxu0 0.0
        %526 = vmatpush1.msra.mxu0 %v313
        %527 = vmatprep.subr.mxu0 0.0
        %528 = vmatpush1.msra.mxu0 %v314
        %529 = vmatprep.subr.mxu0 0.0
        %530 = vmatpush1.msra.mxu0 %v315
        %531 = vmatprep.subr.mxu0 0.0
        %532 = vmatpush1.msra.mxu0 %v316
        %533 = vmatprep.subr.mxu0 0.0
        %534 = vmatpush1.msra.mxu0 %v317
        %535 = vmatprep.subr.mxu0 0.0
        %536 = vmatpush1.msra.mxu0 %v318
        %537 = vmatprep.subr.mxu0 0.0
        %538 = vmatpush1.msra.mxu0 %v319
        %539 = vmatprep.subr.mxu0 0.0
        %540 = vmatpush1.msra.mxu0 0.0
        %541 = vmatprep.subr.mxu0 0.0
        %542 = vmatpush1.msra.mxu0 0.0
        %543 = vmatprep.subr.mxu0 0.0
        %544 = vmatpush1.msra.mxu0 0.0
        %545 = vmatprep.subr.mxu0 0.0
        %546 = vmatpush1.msra.mxu0 0.0
        %547 = vmatprep.subr.mxu0 0.0
        %548 = vmatpush1.msra.mxu0 0.0
        %549 = vmatprep.subr.mxu0 0.0
        %550 = vmatpush1.msra.mxu0 0.0
        %551 = vmatprep.subr.mxu0 0.0
        %552 = vmatpush1.msra.mxu0 0.0
        %553 = vmatprep.subr.mxu0 0.0
        %554 = vmatpush1.msra.mxu0 0.0
        %555 = vmatprep.subr.mxu0 0.0
        %556 = vmatpush1.msra.mxu0 0.0
        %557 = vmatprep.subr.mxu0 0.0
        %558 = vmatpush1.msra.mxu0 0.0
        %559 = vmatprep.subr.mxu0 0.0
        %560 = vmatpush1.msra.mxu0 0.0
        %561 = vmatprep.subr.mxu0 0.0
        %562 = vmatpush1.msra.mxu0 0.0
        %563 = vmatprep.subr.mxu0 0.0
        %564 = vmatpush1.msra.mxu0 0.0
        %565 = vmatprep.subr.mxu0 0.0
        %566 = vmatpush1.msra.mxu0 0.0
        %567 = vmatprep.subr.mxu0 0.0
        %568 = vmatpush1.msra.mxu0 0.0
        %569 = vmatprep.subr.mxu0 0.0
        %570 = vmatpush1.msra.mxu0 0.0
        %571 = vmatprep.mubr.f32.mxu0 0.0
        %572 = vmatmul.mubr.f32.gmra.mrb[0].mxu0 %v505
        %v573 = vpop.f32.mrb[0].mxu0
        %v574 = vadd.f32 0.0, %v573
        %v575 = vpop.f32.mrb[0].mxu0
        %576 = vdwg.mxu0
        %577 = vmatprep.subr.mxu0 0.0
        %578 = vmatpush1.msra.mxu0 %v320
        %579 = vmatprep.subr.mxu0 0.0
        %580 = vmatpush1.msra.mxu0 %v321
        %581 = vmatprep.subr.mxu0 0.0
        %582 = vmatpush1.msra.mxu0 %v322
        %583 = vmatprep.subr.mxu0 0.0
        %584 = vmatpush1.msra.mxu0 %v323
        %585 = vmatprep.subr.mxu0 0.0
        %586 = vmatpush1.msra.mxu0 %v324
        %587 = vmatprep.subr.mxu0 0.0
        %588 = vmatpush1.msra.mxu0 %v325
        %589 = vmatprep.subr.mxu0 0.0
        %590 = vmatpush1.msra.mxu0 %v326
        %591 = vmatprep.subr.mxu0 0.0
        %592 = vmatpush1.msra.mxu0 %v327
        %593 = vmatprep.subr.mxu0 0.0
        %594 = vmatpush1.msra.mxu0 %v328
        %595 = vmatprep.subr.mxu0 0.0
        %596 = vmatpush1.msra.mxu0 %v329
        %597 = vmatprep.subr.mxu0 0.0
        %598 = vmatpush1.msra.mxu0 %v330
        %599 = vmatprep.subr.mxu0 0.0
        %600 = vmatpush1.msra.mxu0 %v331
        %601 = vmatprep.subr.mxu0 0.0
        %602 = vmatpush1.msra.mxu0 %v332
        %603 = vmatprep.subr.mxu0 0.0
        %604 = vmatpush1.msra.mxu0 %v333
        %605 = vmatprep.subr.mxu0 0.0
        %606 = vmatpush1.msra.mxu0 %v334
        %607 = vmatprep.subr.mxu0 0.0
        %608 = vmatpush1.msra.mxu0 %v335
        %609 = vmatprep.subr.mxu0 0.0
        %610 = vmatpush1.msra.mxu0 0.0
        %611 = vmatprep.subr.mxu0 0.0
        %612 = vmatpush1.msra.mxu0 0.0
        %613 = vmatprep.subr.mxu0 0.0
        %614 = vmatpush1.msra.mxu0 0.0
        %615 = vmatprep.subr.mxu0 0.0
        %616 = vmatpush1.msra.mxu0 0.0
        %617 = vmatprep.subr.mxu0 0.0
        %618 = vmatpush1.msra.mxu0 0.0
        %619 = vmatprep.subr.mxu0 0.0
        %620 = vmatpush1.msra.mxu0 0.0
        %621 = vmatprep.subr.mxu0 0.0
        %622 = vmatpush1.msra.mxu0 0.0
        %623 = vmatprep.subr.mxu0 0.0
        %624 = vmatpush1.msra.mxu0 0.0
        %625 = vmatprep.subr.mxu0 0.0
        %626 = vmatpush1.msra.mxu0 0.0
        %627 = vmatprep.subr.mxu0 0.0
        %628 = vmatpush1.msra.mxu0 0.0
        %629 = vmatprep.subr.mxu0 0.0
        %630 = vmatpush1.msra.mxu0 0.0
        %631 = vmatprep.subr.mxu0 0.0
        %632 = vmatpush1.msra.mxu0 0.0
        %633 = vmatprep.subr.mxu0 0.0
        %634 = vmatpush1.msra.mxu0 0.0
        %635 = vmatprep.subr.mxu0 0.0
        %636 = vmatpush1.msra.mxu0 0.0
        %637 = vmatprep.subr.mxu0 0.0
        %638 = vmatpush1.msra.mxu0 0.0
        %639 = vmatprep.subr.mxu0 0.0
        %640 = vmatpush1.msra.mxu0 0.0
        %641 = vmatprep.mubr.f32.mxu0 0.0
        %642 = vmatmul.mubr.f32.gmra.mrb[0].mxu0 %v506
        %v643 = vpop.f32.mrb[0].mxu0
        %v644 = vadd.f32 0.0, %v643
        %v645 = vpop.f32.mrb[0].mxu0
        %646 = vdwg.mxu0
        %647 = vst [vmem:[%s285] sm:$0xff] %v574
        %648 = vst [vmem:[%s285 + $0x8] sm:$0xff] %v644
        %649 = vst [vmem:[%s292] sm:$0xff] %v505
        %650 = vst [vmem:[%s292 + $0x8] sm:$0xff] %v506
        %s651 = sand.u32 %s128, 1
        %s652 = scalar_lea.sflag [#allocation4], %s651
        %s653 = sand.u32 %s128, 1
        %s654 = smul.addr %s653, 16
        %s655 = scalar_lea.vmem [#allocation8], %s654
        %s656 = sand.u32 %s156, 1
        %s657 = scalar_lea.sflag [#allocation10], %s656
        %s658 = sand.u32 %s156, 1
        %s659 = smul.addr %s658, 16
        %s660 = scalar_lea.vmem [#allocation9], %s659
        // Predicated region
        $region45: #{tpu_custom_call.1} parent=31 // pred_check
          %p661 = pneg %p138
        $region46: #{tpu_custom_call.1} parent=31 // pred_check_branch
          %663 = sbr.rel (%p661) target = $region48
        $region47: #{tpu_custom_call.1} parent=31 // pred_region
          %s664 = smul.u32 2, %s30
          %s666 = ssub.s32 256, 256
          %667 = vsyncadd %s652, %s666
          %s668 = sadd.s32 %s31, %s664
          %s669 = smul.addr %s668, 128
          %s670 = scalar_lea.hbm %s3, %s669
          %s671 = sshll.u32 %s655, 4
          %s672 = int_to_ptr.vmem [resolvable:$true] %s671
          %677 = dma.vmem_to_hbm [thread:$0]  %s672, 256, %s670, %s652, 128, 128, 8
        $region48: #{tpu_custom_call.1} parent=31 // pred_fallthru
          _
        // Predicated region
        $region49: #{tpu_custom_call.1} parent=31 // pred_check
          %p678 = pneg %p166
        $region50: #{tpu_custom_call.1} parent=31 // pred_check_branch
          %680 = sbr.rel (%p678) target = $region52
        $region51: #{tpu_custom_call.1} parent=31 // pred_region
          %s681 = smul.u32 2, %s30
          %s683 = ssub.s32 256, 256
          %684 = vsyncadd %s657, %s683
          %s685 = sadd.s32 %s31, %s681
          %s686 = smul.addr %s685, 128
          %s687 = scalar_lea.hbm %s4, %s686
          %s688 = sshll.u32 %s660, 4
          %s689 = int_to_ptr.vmem [resolvable:$true] %s688
          %694 = dma.vmem_to_hbm [thread:$0]  %s689, 256, %s687, %s657, 128, 128, 8
        $region52: #{tpu_custom_call.1} parent=31 // pred_fallthru
          _
      $region32: #{tpu_custom_call.1} parent=5 // pred_fallthru
        _
      %p695 = scmp.le.s32.totalorder 2, %s21
      // Predicated region
      $region53: #{tpu_custom_call.1} parent=5 // pred_check
        %p696 = pneg %p695
      $region54: #{tpu_custom_call.1} parent=5 // pred_check_branch
        %698 = sbr.rel (%p696) target = $region56
      $region55: #{tpu_custom_call.1} parent=5 // pred_region
        %s699 = ssub.s32 %s21, 2
        // Predicated region
        $region57: #{tpu_custom_call.1} parent=55 // pred_check
          %p700 = pneg %p144
        $region58: #{tpu_custom_call.1} parent=55 // pred_check_branch
          %702 = sbr.rel (%p700) target = $region60
        $region59: #{tpu_custom_call.1} parent=55 // pred_region
          %s703 = sand.u32 %s129, 1
          %s704 = scalar_lea.sflag [#allocation4], %s703
          %s705 = sand.u32 %s129, 1
          %s706 = smul.addr %s705, 16
          %s707 = scalar_lea.vmem [#allocation8], %s706
          %708 = dma.done %s704, 256
        $region60: #{tpu_custom_call.1} parent=55 // pred_fallthru
          _
        // Predicated region
        $region61: #{tpu_custom_call.1} parent=55 // pred_check
          %p709 = pneg %p172
        $region62: #{tpu_custom_call.1} parent=55 // pred_check_branch
          %711 = sbr.rel (%p709) target = $region64
        $region63: #{tpu_custom_call.1} parent=55 // pred_region
          %s712 = sand.u32 %s157, 1
          %s713 = scalar_lea.sflag [#allocation10], %s712
          %s714 = sand.u32 %s157, 1
          %s715 = smul.addr %s714, 16
          %s716 = scalar_lea.vmem [#allocation9], %s715
          %717 = dma.done %s713, 256
        $region64: #{tpu_custom_call.1} parent=55 // pred_fallthru
          _
      $region56: #{tpu_custom_call.1} parent=5 // pred_fallthru
        _
    $region6: #{tpu_custom_call.1} parent=1 // loop_footer
      %s25 = sadd.s32 1, %s21
    $region7: #{tpu_custom_call.1} parent=1 // loop_footer_branch
      %20 = sbr.rel target = $region3
    $region8: #{tpu_custom_call.1} parent=1 // loop_exit
      _
    %718 = vsyncpa [#allocation3], 1
    %s719 = scalar_lea.sflag [#allocation3], 1
    %720 = vsyncpa %s719, 1
    %721 = vsyncpa [#allocation6], 1
    %722 = vsyncpa [#allocation4], 1
    %s723 = scalar_lea.sflag [#allocation4], 1
    %724 = vsyncpa %s723, 1
    %725 = vsyncpa [#allocation10], 1
    %s726 = scalar_lea.sflag [#allocation10], 1
    %727 = vsyncpa %s726, 1

// kernel: tpu_custom_call.1
$region0: #{tpu_custom_call.1}
  #allocation0 [shape = 'u32[]', space=smem, size = 0x4, offset = 0x4, fixed_abs, tag = 'smem constant byte address 0x4 - core index']
  #allocation1 [shape = 'u32[144,128]{1,0:T(1,128)}', space=vmem, size = 0x12000, scoped, tag = 'internal scratch']
  %s0 = inlined_call_operand.hbm [shape: f32[4,8,16], index: 0, kind: input, shape index: {}]
  %s1 = inlined_call_operand.hbm [shape: f32[4,16,128], index: 1, kind: input, shape index: {}]
  %s2 = inlined_call_operand.hbm [shape: f32[4,128,128], index: 2, kind: input, shape index: {}]
  %s3 = inlined_call_operand.hbm [shape: f32[4,8,128], index: 3, kind: output, shape index: {0}]
  %s4 = inlined_call_operand.hbm [shape: f32[4,8,128], index: 4, kind: output, shape index: {1}]
  %5 = xla_tuple %s3, %s4
  %s6 = sld [smem:[#allocation0]]
  $region65: #{tpu_custom_call.1} parent=0
    _
  %s8 = ssub.s32 1, %s6
  %s9 = scalar_select 0, %s8, %s6
  $region1: #{tpu_custom_call.1} parent=0
    #allocation2 [shape = 'u8[16384]{0}', space=vmem, size = 0x4000, scoped, tag = 'input window, operand 0']
    #allocation3 [shape = 's32[2]{0}', space=sflag, size = 0x8, scoped, tag = 'scoped memory for tpu_custom_call.1']
    #allocation4 [shape = 's32[2]{0}', space=sflag, size = 0x8, scoped, tag = 'scoped memory for tpu_custom_call.1']
    #allocation5 [shape = 'u8[32768]{0}', space=vmem, size = 0x8000, scoped, tag = 'input window, operand 1']
    #allocation6 [shape = 's32[2]{0}', space=sflag, size = 0x8, scoped, tag = 'scoped memory for tpu_custom_call.1']
    #allocation7 [shape = 'u8[262144]{0}', space=vmem, size = 0x40000, scoped, tag = 'input window, operand 2']
    #allocation8 [shape = 'u8[16384]{0}', space=vmem, size = 0x4000, scoped, tag = 'output window, operand 0']
    #allocation9 [shape = 'u8[16384]{0}', space=vmem, size = 0x4000, scoped, tag = 'output window, operand 1']
    #allocation10 [shape = 's32[2]{0}', space=sflag, size = 0x8, scoped, tag = 'scoped memory for tpu_custom_call.1']
    %10 = vsyncpa [#allocation3], 0
    %s11 = scalar_lea.sflag [#allocation3], 1
    %12 = vsyncpa %s11, 0
    %13 = vsyncpa [#allocation6], 0
    %s14 = scalar_lea.sflag [#allocation6], 1
    %15 = vsyncpa %s14, 0
    %16 = vsyncpa [#allocation4], 0
    %s17 = scalar_lea.sflag [#allocation4], 1
    %18 = vsyncpa %s17, 0
    %19 = vsyncpa [#allocation10], 0
    %s20 = scalar_lea.sflag [#allocation10], 1
    %21 = vsyncpa %s20, 0
    loop: start=0, step=1, limit=4
    $region2: #{tpu_custom_call.1} parent=1 // loop_pre_header
      _
    $region3: #{tpu_custom_call.1} parent=1 // loop_header
      %s23 = sphi 0, %s27
      %p24 = scmp.ge.s32.totalorder %s23, 4
      %s30 = sphi 0, %s42
      %s31 = sphi 0, %s38
      %s32 = sphi 0, %s30
      %s33 = sphi 0, %s31
      %s34 = sphi 0, %s32
      %s35 = sphi 0, %s33
      %s47 = sphi 0, %s49
      %s50 = sphi 0, %s47
      %s51 = sphi 0, %s50
      %s67 = sphi 0, %s51
      %s73 = sphi 0, %s75
      %s76 = sphi 0, %s73
      %s77 = sphi 0, %s76
      %s93 = sphi 0, %s77
      %s99 = sphi 0, %s101
      %s102 = sphi 0, %s99
      %s103 = sphi 0, %s102
      %s119 = sphi 0, %s103
      %s127 = sphi 0, %s129
      %s130 = sphi 0, %s127
      %s131 = sphi 0, %s130
      %s147 = sphi 0, %s131
      %s155 = sphi 0, %s157
      %s158 = sphi 0, %s155
      %s159 = sphi 0, %s158
      %s175 = sphi 0, %s159
    $region4: #{tpu_custom_call.1} parent=1 // loop_header_branch
      %26 = sbr.rel (%p24) target = $region8
    $region5: #{tpu_custom_call.1} parent=1 // loop_body
      %s28 = ssub.s32 %s23, 1
      %s29 = ssub.s32 %s23, 2
      %s36 = sadd.s32 1, %s31
      %p37 = scmp.ge.s32.totalorder %s36, 1
      %s38 = scalar_select %p37, 0, %s36
      %s39 = sadd.s32 1, %s30
      %s40 = scalar_select %p37, %s39, %s30
      %p41 = scmp.ge.s32.totalorder %s40, 2
      %s42 = scalar_select %p41, 0, %s40
      %s43 = ssub.s32 %s30, %s42
      %s44 = ssub.s32 %s31, %s38
      %s45 = sor.u32 %s43, %s44
      %p46 = scmp.eq.s32.totalorder %s45, 0
      %s48 = sadd.s32 %s47, 1
      %s49 = scalar_select %p46, %s47, %s48
      %p52 = pneg %p46
      %p53 = scmp.eq.s32.totalorder %s23, 1
      %p54 = por %p52, %p53
      %p55 = scmp.ne.s32.totalorder %s47, %s50
      %p56 = scmp.eq.s32.totalorder %s23, 0
      %p57 = por %p55, %p56
      %p58 = scmp.ne.s32.totalorder %s47, %s50
      %p59 = scmp.eq.s32.totalorder %s28, 1
      %p60 = por %p58, %p59
      %p61 = scmp.ne.s32.totalorder %s50, %s51
      %p62 = scmp.eq.s32.totalorder %s28, 0
      %p63 = por %p61, %p62
      %p64 = scmp.ne.s32.totalorder %s50, %s51
      %p65 = scmp.eq.s32.totalorder %s29, 1
      %p66 = por %p64, %p65
      %p68 = scmp.ne.s32.totalorder %s51, %s67
      %p69 = scmp.eq.s32.totalorder %s29, 0
      %p70 = por %p68, %p69
      %s71 = ssub.s32 %s30, %s42
      %p72 = scmp.eq.s32.totalorder %s71, 0
      %s74 = sadd.s32 %s73, 1
      %s75 = scalar_select %p72, %s73, %s74
      %p78 = pneg %p72
      %p79 = scmp.eq.s32.totalorder %s23, 1
      %p80 = por %p78, %p79
      %p81 = scmp.ne.s32.totalorder %s73, %s76
      %p82 = scmp.eq.s32.totalorder %s23, 0
      %p83 = por %p81, %p82
      %p84 = scmp.ne.s32.totalorder %s73, %s76
      %p85 = scmp.eq.s32.totalorder %s28, 1
      %p86 = por %p84, %p85
      %p87 = scmp.ne.s32.totalorder %s76, %s77
      %p88 = scmp.eq.s32.totalorder %s28, 0
      %p89 = por %p87, %p88
      %p90 = scmp.ne.s32.totalorder %s76, %s77
      %p91 = scmp.eq.s32.totalorder %s29, 1
      %p92 = por %p90, %p91
      %p94 = scmp.ne.s32.totalorder %s77, %s93
      %p95 = scmp.eq.s32.totalorder %s29, 0
      %p96 = por %p94, %p95
      %s97 = ssub.s32 %s30, %s42
      %p98 = scmp.eq.s32.totalorder %s97, 0
      %s100 = sadd.s32 %s99, 1
      %s101 = scalar_select %p98, %s99, %s100
      %p104 = pneg %p98
      %p105 = scmp.eq.s32.totalorder %s23, 1
      %p106 = por %p104, %p105
      %p107 = scmp.ne.s32.totalorder %s99, %s102
      %p108 = scmp.eq.s32.totalorder %s23, 0
      %p109 = por %p107, %p108
      %p110 = scmp.ne.s32.totalorder %s99, %s102
      %p111 = scmp.eq.s32.totalorder %s28, 1
      %p112 = por %p110, %p111
      %p113 = scmp.ne.s32.totalorder %s102, %s103
      %p114 = scmp.eq.s32.totalorder %s28, 0
      %p115 = por %p113, %p114
      %p116 = scmp.ne.s32.totalorder %s102, %s103
      %p117 = scmp.eq.s32.totalorder %s29, 1
      %p118 = por %p116, %p117
      %p120 = scmp.ne.s32.totalorder %s103, %s119
      %p121 = scmp.eq.s32.totalorder %s29, 0
      %p122 = por %p120, %p121
      %s123 = ssub.s32 %s30, %s42
      %s124 = ssub.s32 %s31, %s38
      %s125 = sor.u32 %s123, %s124
      %p126 = scmp.eq.s32.totalorder %s125, 0
      %s128 = sadd.s32 %s127, 1
      %s129 = scalar_select %p126, %s127, %s128
      %p132 = pneg %p126
      %p133 = scmp.eq.s32.totalorder %s23, 1
      %p134 = por %p132, %p133
      %p135 = scmp.ne.s32.totalorder %s127, %s130
      %p136 = scmp.eq.s32.totalorder %s23, 0
      %p137 = por %p135, %p136
      %p138 = scmp.ne.s32.totalorder %s127, %s130
      %p139 = scmp.eq.s32.totalorder %s28, 1
      %p140 = por %p138, %p139
      %p141 = scmp.ne.s32.totalorder %s130, %s131
      %p142 = scmp.eq.s32.totalorder %s28, 0
      %p143 = por %p141, %p142
      %p144 = scmp.ne.s32.totalorder %s130, %s131
      %p145 = scmp.eq.s32.totalorder %s29, 1
      %p146 = por %p144, %p145
      %p148 = scmp.ne.s32.totalorder %s131, %s147
      %p149 = scmp.eq.s32.totalorder %s29, 0
      %p150 = por %p148, %p149
      %s151 = ssub.s32 %s30, %s42
      %s152 = ssub.s32 %s31, %s38
      %s153 = sor.u32 %s151, %s152
      %p154 = scmp.eq.s32.totalorder %s153, 0
      %s156 = sadd.s32 %s155, 1
      %s157 = scalar_select %p154, %s155, %s156
      %p160 = pneg %p154
      %p161 = scmp.eq.s32.totalorder %s23, 1
      %p162 = por %p160, %p161
      %p163 = scmp.ne.s32.totalorder %s155, %s158
      %p164 = scmp.eq.s32.totalorder %s23, 0
      %p165 = por %p163, %p164
      %p166 = scmp.ne.s32.totalorder %s155, %s158
      %p167 = scmp.eq.s32.totalorder %s28, 1
      %p168 = por %p166, %p167
      %p169 = scmp.ne.s32.totalorder %s158, %s159
      %p170 = scmp.eq.s32.totalorder %s28, 0
      %p171 = por %p169, %p170
      %p172 = scmp.ne.s32.totalorder %s158, %s159
      %p173 = scmp.eq.s32.totalorder %s29, 1
      %p174 = por %p172, %p173
      %p176 = scmp.ne.s32.totalorder %s159, %s175
      %p177 = scmp.eq.s32.totalorder %s29, 0
      %p178 = por %p176, %p177
      %p179 = scmp.le.s32.totalorder 1, %s23
      %p180 = scmp.lt.s32.totalorder %s23, 3
      %p181 = pnand %p179, %p180
      %p182 = pneg %p181
      // Predicated region
      $region9: #{tpu_custom_call.1} parent=5 // pred_check
        _
      $region10: #{tpu_custom_call.1} parent=5 // pred_check_branch
        %184 = sbr.rel (%p181) target = $region12
      $region11: #{tpu_custom_call.1} parent=5 // pred_region
        %s185 = ssub.s32 %s23, 1
      $region12: #{tpu_custom_call.1} parent=5 // pred_fallthru
        _
      %p186 = scmp.lt.s32.totalorder %s23, 2
      // Predicated region
      $region13: #{tpu_custom_call.1} parent=5 // pred_check
        %p187 = pneg %p186
      $region14: #{tpu_custom_call.1} parent=5 // pred_check_branch
        %189 = sbr.rel (%p187) target = $region16
      $region15: #{tpu_custom_call.1} parent=5 // pred_region
        // Predicated region
        $region17: #{tpu_custom_call.1} parent=15 // pred_check
          %p190 = pneg %p57
        $region18: #{tpu_custom_call.1} parent=15 // pred_check_branch
          %192 = sbr.rel (%p190) target = $region20
        $region19: #{tpu_custom_call.1} parent=15 // pred_region
          %s193 = sand.u32 %s47, 1
          %s194 = scalar_lea.sflag [#allocation3], %s193
          %s195 = sand.u32 %s47, 1
          %s196 = smul.addr %s195, 16
          %s197 = scalar_lea.vmem [#allocation2], %s196
          %s198 = smul.u32 2, %s30
          %s200 = ssub.s32 256, 256
          %201 = vsyncadd %s194, %s200
          %s202 = sadd.s32 %s31, %s198
          %s203 = smul.addr %s202, 128
          %s204 = scalar_lea.hbm %s0, %s203
          %s205 = sshll.u32 %s197, 4
          %s206 = int_to_ptr.vmem [resolvable:$true] %s205
          %211 = dma.hbm_to_vmem [thread:$0]  %s204, 256, %s206, %s194, 128, 128, 8
        $region20: #{tpu_custom_call.1} parent=15 // pred_fallthru
          _
        // Predicated region
        $region21: #{tpu_custom_call.1} parent=15 // pred_check
          %p212 = pneg %p83
        $region22: #{tpu_custom_call.1} parent=15 // pred_check_branch
          %214 = sbr.rel (%p212) target = $region24
        $region23: #{tpu_custom_call.1} parent=15 // pred_region
          %s215 = sand.u32 %s23, 1
          %s216 = scalar_lea.sflag [#allocation6], %s215
          %s217 = sand.u32 %s73, 1
          %s218 = smul.addr %s217, 32
          %s219 = scalar_lea.vmem [#allocation5], %s218
          %s220 = smul.u32 2, %s30
          %s222 = ssub.s32 512, 512
          %223 = vsyncadd %s216, %s222
          %s224 = smul.addr %s220, 2
          %s225 = smul.addr %s224, 128
          %s226 = scalar_lea.hbm %s1, %s225
          %s227 = sshll.u32 %s219, 4
          %s228 = int_to_ptr.vmem [resolvable:$true] %s227
          %233 = dma.hbm_to_vmem [thread:$0]  %s226, 512, %s228, %s216, 128, 128, 8
        $region24: #{tpu_custom_call.1} parent=15 // pred_fallthru
          _
        // Predicated region
        $region25: #{tpu_custom_call.1} parent=15 // pred_check
          %p234 = pneg %p109
        $region26: #{tpu_custom_call.1} parent=15 // pred_check_branch
          %236 = sbr.rel (%p234) target = $region28
        $region27: #{tpu_custom_call.1} parent=15 // pred_region
          %s237 = sand.u32 %s23, 1
          %s238 = scalar_lea.sflag [#allocation6], %s237
          %s239 = sand.u32 %s99, 1
          %s240 = smul.addr %s239, 256
          %s241 = scalar_lea.vmem [#allocation7], %s240
          %s242 = smul.u32 2, %s30
          %s244 = ssub.s32 4096, 4096
          %245 = vsyncadd %s238, %s244
          %s246 = smul.addr %s242, 16
          %s247 = smul.addr %s246, 128
          %s248 = scalar_lea.hbm %s2, %s247
          %s249 = sshll.u32 %s241, 4
          %s250 = int_to_ptr.vmem [resolvable:$true] %s249
          %255 = dma.hbm_to_vmem [thread:$0]  %s248, 4096, %s250, %s238, 128, 128, 8
        $region28: #{tpu_custom_call.1} parent=15 // pred_fallthru
          _
      $region16: #{tpu_custom_call.1} parent=5 // pred_fallthru
        _
      %p256 = scmp.le.s32.totalorder 1, %s23
      %p257 = scmp.lt.s32.totalorder %s23, 3
      %p258 = pnand %p256, %p257
      %p259 = pneg %p258
      // Predicated region
      $region29: #{tpu_custom_call.1} parent=5 // pred_check
        _
      $region30: #{tpu_custom_call.1} parent=5 // pred_check_branch
        %261 = sbr.rel (%p258) target = $region32
      $region31: #{tpu_custom_call.1} parent=5 // pred_region
        %s262 = ssub.s32 %s23, 1
        %s263 = sand.u32 %s50, 1
        %s264 = scalar_lea.sflag [#allocation3], %s263
        %s265 = sand.u32 %s50, 1
        %s266 = smul.addr %s265, 16
        %s267 = scalar_lea.vmem [#allocation2], %s266
        // Predicated region
        $region33: #{tpu_custom_call.1} parent=31 // pred_check
          %p268 = pneg %p63
        $region34: #{tpu_custom_call.1} parent=31 // pred_check_branch
          %270 = sbr.rel (%p268) target = $region36
        $region35: #{tpu_custom_call.1} parent=31 // pred_region
          %271 = dma.done %s264, 256
        $region36: #{tpu_custom_call.1} parent=31 // pred_fallthru
          _
        %s272 = sand.u32 %s28, 1
        %s273 = scalar_lea.sflag [#allocation6], %s272
        %s274 = sand.u32 %s76, 1
        %s275 = smul.addr %s274, 32
        %s276 = scalar_lea.vmem [#allocation5], %s275
        // Predicated region
        $region37: #{tpu_custom_call.1} parent=31 // pred_check
          %p277 = pneg %p89
        $region38: #{tpu_custom_call.1} parent=31 // pred_check_branch
          %279 = sbr.rel (%p277) target = $region40
        $region39: #{tpu_custom_call.1} parent=31 // pred_region
          %280 = dma.done %s273, 512
        $region40: #{tpu_custom_call.1} parent=31 // pred_fallthru
          _
        %s281 = sand.u32 %s28, 1
        %s282 = scalar_lea.sflag [#allocation6], %s281
        %s283 = sand.u32 %s102, 1
        %s284 = smul.addr %s283, 256
        %s285 = scalar_lea.vmem [#allocation7], %s284
        // Predicated region
        $region41: #{tpu_custom_call.1} parent=31 // pred_check
          %p286 = pneg %p115
        $region42: #{tpu_custom_call.1} parent=31 // pred_check_branch
          %288 = sbr.rel (%p286) target = $region44
        $region43: #{tpu_custom_call.1} parent=31 // pred_region
          %289 = dma.done %s282, 4096
        $region44: #{tpu_custom_call.1} parent=31 // pred_fallthru
          _
        %s290 = sand.u32 %s50, 1
        %s291 = scalar_lea.sflag [#allocation3], %s290
        %s292 = sand.u32 %s50, 1
        %s293 = smul.addr %s292, 16
        %s294 = scalar_lea.vmem [#allocation2], %s293
        %p295 = pneg %p63
        %p296 = pneg %p60
        %s297 = sand.u32 %s28, 1
        %s298 = scalar_lea.sflag [#allocation6], %s297
        %s299 = sand.u32 %s76, 1
        %s300 = smul.addr %s299, 32
        %s301 = scalar_lea.vmem [#allocation5], %s300
        %p302 = pneg %p89
        %p303 = pneg %p86
        %s304 = sand.u32 %s28, 1
        %s305 = scalar_lea.sflag [#allocation6], %s304
        %s306 = sand.u32 %s102, 1
        %s307 = smul.addr %s306, 256
        %s308 = scalar_lea.vmem [#allocation7], %s307
        %p309 = pneg %p115
        %p310 = pneg %p112
        %p311 = pneg %p143
        %p312 = pneg %p140
        %s313 = sand.u32 %s130, 1
        %s314 = scalar_lea.sflag [#allocation4], %s313
        %s315 = sand.u32 %s130, 1
        %s316 = smul.addr %s315, 16
        %s317 = scalar_lea.vmem [#allocation8], %s316
        %p318 = pneg %p171
        %p319 = pneg %p168
        %s320 = sand.u32 %s158, 1
        %s321 = scalar_lea.sflag [#allocation10], %s320
        %s322 = sand.u32 %s158, 1
        %s323 = smul.addr %s322, 16
        %s324 = scalar_lea.vmem [#allocation9], %s323
        %s325 = smul.u32 2, %s32
        %s326 = smul.u32 2, %s32
        %s327 = smul.u32 2, %s32
        %s328 = smul.u32 2, %s32
        %s329 = smul.u32 2, %s32
        %v330 = vld [vmem:[%s267] sm:$0xff]
        %v331 = vld [vmem:[%s267 + $0x8] sm:$0xff]
        %v332 = vld [vmem:[%s276] sm:$0xff]
        %v333 = vld [vmem:[%s276 + $0x8] sm:$0xff]
        %v334 = vld [vmem:[%s276 + $0x10] sm:$0xff]
        %v335 = vld [vmem:[%s276 + $0x18] sm:$0xff]
        %v336 = vld [vmem:[%s285] sm:$0xff]
        %v337 = vld [vmem:[%s285 + $0x8] sm:$0xff]
        %v338 = vld [vmem:[%s285 + $0x10] sm:$0xff]
        %v339 = vld [vmem:[%s285 + $0x18] sm:$0xff]
        %v340 = vld [vmem:[%s285 + $0x20] sm:$0xff]
        %v341 = vld [vmem:[%s285 + $0x28] sm:$0xff]
        %v342 = vld [vmem:[%s285 + $0x30] sm:$0xff]
        %v343 = vld [vmem:[%s285 + $0x38] sm:$0xff]
        %v344 = vld [vmem:[%s285 + $0x40] sm:$0xff]
        %v345 = vld [vmem:[%s285 + $0x48] sm:$0xff]
        %v346 = vld [vmem:[%s285 + $0x50] sm:$0xff]
        %v347 = vld [vmem:[%s285 + $0x58] sm:$0xff]
        %v348 = vld [vmem:[%s285 + $0x60] sm:$0xff]
        %v349 = vld [vmem:[%s285 + $0x68] sm:$0xff]
        %v350 = vld [vmem:[%s285 + $0x70] sm:$0xff]
        %v351 = vld [vmem:[%s285 + $0x78] sm:$0xff]
        %v352 = vld [vmem:[%s285 + $0x80] sm:$0xff]
        %v353 = vld [vmem:[%s285 + $0x88] sm:$0xff]
        %v354 = vld [vmem:[%s285 + $0x90] sm:$0xff]
        %v355 = vld [vmem:[%s285 + $0x98] sm:$0xff]
        %v356 = vld [vmem:[%s285 + $0xa0] sm:$0xff]
        %v357 = vld [vmem:[%s285 + $0xa8] sm:$0xff]
        %v358 = vld [vmem:[%s285 + $0xb0] sm:$0xff]
        %v359 = vld [vmem:[%s285 + $0xb8] sm:$0xff]
        %v360 = vld [vmem:[%s285 + $0xc0] sm:$0xff]
        %v361 = vld [vmem:[%s285 + $0xc8] sm:$0xff]
        %v362 = vld [vmem:[%s285 + $0xd0] sm:$0xff]
        %v363 = vld [vmem:[%s285 + $0xd8] sm:$0xff]
        %v364 = vld [vmem:[%s285 + $0xe0] sm:$0xff]
        %v365 = vld [vmem:[%s285 + $0xe8] sm:$0xff]
        %v366 = vld [vmem:[%s285 + $0xf0] sm:$0xff]
        %v367 = vld [vmem:[%s285 + $0xf8] sm:$0xff]
        %v368 = vmul.f32 %v330, 0.25
        %v369 = vmul.f32 %v331, 0.25
        %v370 = vlaneseq
        %v371 = vand.u32 %v370, 127
        %vm372 = vcmp.lt.s32.totalorder %v371, 8
        %v373 = vsel %vm372, 0.0, -1e+30
        %vm374 = vcmask 130048
        %v376 = vsel %vm374, %v368, 0
        %378 = vmatprep.subr.mxu0 0.0
        %379 = vmatpush1.msra.mxu0 %v332
        %380 = vmatprep.subr.mxu0 0.0
        %381 = vmatpush1.msra.mxu0 %v333
        %382 = vmatprep.subr.mxu0 0.0
        %383 = vmatpush1.msra.mxu0 0.0
        %384 = vmatprep.subr.mxu0 0.0
        %385 = vmatpush1.msra.mxu0 0.0
        %386 = vmatprep.subr.mxu0 0.0
        %387 = vmatpush1.msra.mxu0 0.0
        %388 = vmatprep.subr.mxu0 0.0
        %389 = vmatpush1.msra.mxu0 0.0
        %390 = vmatprep.subr.mxu0 0.0
        %391 = vmatpush1.msra.mxu0 0.0
        %392 = vmatprep.subr.mxu0 0.0
        %393 = vmatpush1.msra.mxu0 0.0
        %394 = vmatprep.subr.mxu0 0.0
        %395 = vmatpush1.msra.mxu0 0.0
        %396 = vmatprep.subr.mxu0 0.0
        %397 = vmatpush1.msra.mxu0 0.0
        %398 = vmatprep.subr.mxu0 0.0
        %399 = vmatpush1.msra.mxu0 0.0
        %400 = vmatprep.subr.mxu0 0.0
        %401 = vmatpush1.msra.mxu0 0.0
        %402 = vmatprep.subr.mxu0 0.0
        %403 = vmatpush1.msra.mxu0 0.0
        %404 = vmatprep.subr.mxu0 0.0
        %405 = vmatpush1.msra.mxu0 0.0
        %406 = vmatprep.subr.mxu0 0.0
        %407 = vmatpush1.msra.mxu0 0.0
        %408 = vmatprep.subr.mxu0 0.0
        %409 = vmatpush1.msra.mxu0 0.0
        %410 = vmatprep.subr.mxu0 0.0
        %411 = vmatpush1.msra.mxu0 0.0
        %412 = vmatprep.subr.mxu0 0.0
        %413 = vmatpush1.msra.mxu0 0.0
        %414 = vmatprep.subr.mxu0 0.0
        %415 = vmatpush1.msra.mxu0 0.0
        %416 = vmatprep.subr.mxu0 0.0
        %417 = vmatpush1.msra.mxu0 0.0
        %418 = vmatprep.subr.mxu0 0.0
        %419 = vmatpush1.msra.mxu0 0.0
        %420 = vmatprep.subr.mxu0 0.0
        %421 = vmatpush1.msra.mxu0 0.0
        %422 = vmatprep.subr.mxu0 0.0
        %423 = vmatpush1.msra.mxu0 0.0
        %424 = vmatprep.subr.mxu0 0.0
        %425 = vmatpush1.msra.mxu0 0.0
        %426 = vmatprep.subr.mxu0 0.0
        %427 = vmatpush1.msra.mxu0 0.0
        %428 = vmatprep.subr.mxu0 0.0
        %429 = vmatpush1.msra.mxu0 0.0
        %430 = vmatprep.subr.mxu0 0.0
        %431 = vmatpush1.msra.mxu0 0.0
        %432 = vmatprep.subr.mxu0 0.0
        %433 = vmatpush1.msra.mxu0 0.0
        %434 = vmatprep.subr.mxu0 0.0
        %435 = vmatpush1.msra.mxu0 0.0
        %436 = vmatprep.subr.mxu0 0.0
        %437 = vmatpush1.msra.mxu0 0.0
        %438 = vmatprep.subr.mxu0 0.0
        %439 = vmatpush1.msra.mxu0 0.0
        %440 = vmatprep.subr.mxu0 0.0
        %441 = vmatpush1.msra.mxu0 0.0
        %442 = vmatprep.mubr.f32.mxu0 0.0
        %443 = vmatmul.mubr.f32.gmra.mrb[0].mxu0 %v376
        %v444 = vpop.f32.mrb[0].mxu0
        %v445 = vadd.f32 %v373, %v444
        %v446 = vpop.f32.mrb[0].mxu0
        %447 = vdwg.mxu0
        %v449 = vsel %vm374, %v369, 0
        %451 = vmatprep.subr.mxu0 0.0
        %452 = vmatpush1.msra.mxu0 %v334
        %453 = vmatprep.subr.mxu0 0.0
        %454 = vmatpush1.msra.mxu0 %v335
        %455 = vmatprep.subr.mxu0 0.0
        %456 = vmatpush1.msra.mxu0 0.0
        %457 = vmatprep.subr.mxu0 0.0
        %458 = vmatpush1.msra.mxu0 0.0
        %459 = vmatprep.subr.mxu0 0.0
        %460 = vmatpush1.msra.mxu0 0.0
        %461 = vmatprep.subr.mxu0 0.0
        %462 = vmatpush1.msra.mxu0 0.0
        %463 = vmatprep.subr.mxu0 0.0
        %464 = vmatpush1.msra.mxu0 0.0
        %465 = vmatprep.subr.mxu0 0.0
        %466 = vmatpush1.msra.mxu0 0.0
        %467 = vmatprep.subr.mxu0 0.0
        %468 = vmatpush1.msra.mxu0 0.0
        %469 = vmatprep.subr.mxu0 0.0
        %470 = vmatpush1.msra.mxu0 0.0
        %471 = vmatprep.subr.mxu0 0.0
        %472 = vmatpush1.msra.mxu0 0.0
        %473 = vmatprep.subr.mxu0 0.0
        %474 = vmatpush1.msra.mxu0 0.0
        %475 = vmatprep.subr.mxu0 0.0
        %476 = vmatpush1.msra.mxu0 0.0
        %477 = vmatprep.subr.mxu0 0.0
        %478 = vmatpush1.msra.mxu0 0.0
        %479 = vmatprep.subr.mxu0 0.0
        %480 = vmatpush1.msra.mxu0 0.0
        %481 = vmatprep.subr.mxu0 0.0
        %482 = vmatpush1.msra.mxu0 0.0
        %483 = vmatprep.subr.mxu0 0.0
        %484 = vmatpush1.msra.mxu0 0.0
        %485 = vmatprep.subr.mxu0 0.0
        %486 = vmatpush1.msra.mxu0 0.0
        %487 = vmatprep.subr.mxu0 0.0
        %488 = vmatpush1.msra.mxu0 0.0
        %489 = vmatprep.subr.mxu0 0.0
        %490 = vmatpush1.msra.mxu0 0.0
        %491 = vmatprep.subr.mxu0 0.0
        %492 = vmatpush1.msra.mxu0 0.0
        %493 = vmatprep.subr.mxu0 0.0
        %494 = vmatpush1.msra.mxu0 0.0
        %495 = vmatprep.subr.mxu0 0.0
        %496 = vmatpush1.msra.mxu0 0.0
        %497 = vmatprep.subr.mxu0 0.0
        %498 = vmatpush1.msra.mxu0 0.0
        %499 = vmatprep.subr.mxu0 0.0
        %500 = vmatpush1.msra.mxu0 0.0
        %501 = vmatprep.subr.mxu0 0.0
        %502 = vmatpush1.msra.mxu0 0.0
        %503 = vmatprep.subr.mxu0 0.0
        %504 = vmatpush1.msra.mxu0 0.0
        %505 = vmatprep.subr.mxu0 0.0
        %506 = vmatpush1.msra.mxu0 0.0
        %507 = vmatprep.subr.mxu0 0.0
        %508 = vmatpush1.msra.mxu0 0.0
        %509 = vmatprep.subr.mxu0 0.0
        %510 = vmatpush1.msra.mxu0 0.0
        %511 = vmatprep.subr.mxu0 0.0
        %512 = vmatpush1.msra.mxu0 0.0
        %513 = vmatprep.subr.mxu0 0.0
        %514 = vmatpush1.msra.mxu0 0.0
        %515 = vmatprep.mubr.f32.mxu0 0.0
        %516 = vmatmul.mubr.f32.gmra.mrb[0].mxu0 %v449
        %v517 = vpop.f32.mrb[0].mxu0
        %v518 = vadd.f32 %v373, %v517
        %v519 = vpop.f32.mrb[0].mxu0
        %520 = vdwg.mxu0
        %521 = vmax.xlane.f32.xlu0 %v445
        %v522 = vpop.xlane.xlu0 %521
        %523 = vmax.xlane.f32.xlu0 %v518
        %v524 = vpop.xlane.xlu0 %523
        %v525 = vsub.f32 %v445, %v522
        %v526 = vsub.f32 %v518, %v524
        %v527 = vmul.f32 %v525, 1.442695
        %v528 = vpow.pop %v527
        %v529 = vmul.f32 %v526, 1.442695
        %v530 = vpow.pop %v529
        %531 = vadd.xlane.f32.xlu0 %v528
        %v532 = vpop.xlane.xlu0 %531
        %533 = vadd.xlane.f32.xlu0 %v530
        %v534 = vpop.xlane.xlu0 %533
        %v535 = vrcp.pop %v532
        %v536 = vrcp.pop %v534
        %v537 = vmul.f32 %v528, %v535
        %v538 = vmul.f32 %v530, %v536
        %539 = vmatprep.subr.mxu0 0.0
        %540 = vmatpush1.msra.mxu0 %v336
        %541 = vmatprep.subr.mxu0 0.0
        %542 = vmatpush1.msra.mxu0 %v337
        %543 = vmatprep.subr.mxu0 0.0
        %544 = vmatpush1.msra.mxu0 %v338
        %545 = vmatprep.subr.mxu0 0.0
        %546 = vmatpush1.msra.mxu0 %v339
        %547 = vmatprep.subr.mxu0 0.0
        %548 = vmatpush1.msra.mxu0 %v340
        %549 = vmatprep.subr.mxu0 0.0
        %550 = vmatpush1.msra.mxu0 %v341
        %551 = vmatprep.subr.mxu0 0.0
        %552 = vmatpush1.msra.mxu0 %v342
        %553 = vmatprep.subr.mxu0 0.0
        %554 = vmatpush1.msra.mxu0 %v343
        %555 = vmatprep.subr.mxu0 0.0
        %556 = vmatpush1.msra.mxu0 %v344
        %557 = vmatprep.subr.mxu0 0.0
        %558 = vmatpush1.msra.mxu0 %v345
        %559 = vmatprep.subr.mxu0 0.0
        %560 = vmatpush1.msra.mxu0 %v346
        %561 = vmatprep.subr.mxu0 0.0
        %562 = vmatpush1.msra.mxu0 %v347
        %563 = vmatprep.subr.mxu0 0.0
        %564 = vmatpush1.msra.mxu0 %v348
        %565 = vmatprep.subr.mxu0 0.0
        %566 = vmatpush1.msra.mxu0 %v349
        %567 = vmatprep.subr.mxu0 0.0
        %568 = vmatpush1.msra.mxu0 %v350
        %569 = vmatprep.subr.mxu0 0.0
        %570 = vmatpush1.msra.mxu0 %v351
        %571 = vmatprep.subr.mxu0 0.0
        %572 = vmatpush1.msra.mxu0 0.0
        %573 = vmatprep.subr.mxu0 0.0
        %574 = vmatpush1.msra.mxu0 0.0
        %575 = vmatprep.subr.mxu0 0.0
        %576 = vmatpush1.msra.mxu0 0.0
        %577 = vmatprep.subr.mxu0 0.0
        %578 = vmatpush1.msra.mxu0 0.0
        %579 = vmatprep.subr.mxu0 0.0
        %580 = vmatpush1.msra.mxu0 0.0
        %581 = vmatprep.subr.mxu0 0.0
        %582 = vmatpush1.msra.mxu0 0.0
        %583 = vmatprep.subr.mxu0 0.0
        %584 = vmatpush1.msra.mxu0 0.0
        %585 = vmatprep.subr.mxu0 0.0
        %586 = vmatpush1.msra.mxu0 0.0
        %587 = vmatprep.subr.mxu0 0.0
        %588 = vmatpush1.msra.mxu0 0.0
        %589 = vmatprep.subr.mxu0 0.0
        %590 = vmatpush1.msra.mxu0 0.0
        %591 = vmatprep.subr.mxu0 0.0
        %592 = vmatpush1.msra.mxu0 0.0
        %593 = vmatprep.subr.mxu0 0.0
        %594 = vmatpush1.msra.mxu0 0.0
        %595 = vmatprep.subr.mxu0 0.0
        %596 = vmatpush1.msra.mxu0 0.0
        %597 = vmatprep.subr.mxu0 0.0
        %598 = vmatpush1.msra.mxu0 0.0
        %599 = vmatprep.subr.mxu0 0.0
        %600 = vmatpush1.msra.mxu0 0.0
        %601 = vmatprep.subr.mxu0 0.0
        %602 = vmatpush1.msra.mxu0 0.0
        %603 = vmatprep.mubr.f32.mxu0 0.0
        %604 = vmatmul.mubr.f32.gmra.mrb[0].mxu0 %v537
        %v605 = vpop.f32.mrb[0].mxu0
        %v606 = vadd.f32 0.0, %v605
        %v607 = vpop.f32.mrb[0].mxu0
        %608 = vdwg.mxu0
        %609 = vmatprep.subr.mxu0 0.0
        %610 = vmatpush1.msra.mxu0 %v352
        %611 = vmatprep.subr.mxu0 0.0
        %612 = vmatpush1.msra.mxu0 %v353
        %613 = vmatprep.subr.mxu0 0.0
        %614 = vmatpush1.msra.mxu0 %v354
        %615 = vmatprep.subr.mxu0 0.0
        %616 = vmatpush1.msra.mxu0 %v355
        %617 = vmatprep.subr.mxu0 0.0
        %618 = vmatpush1.msra.mxu0 %v356
        %619 = vmatprep.subr.mxu0 0.0
        %620 = vmatpush1.msra.mxu0 %v357
        %621 = vmatprep.subr.mxu0 0.0
        %622 = vmatpush1.msra.mxu0 %v358
        %623 = vmatprep.subr.mxu0 0.0
        %624 = vmatpush1.msra.mxu0 %v359
        %625 = vmatprep.subr.mxu0 0.0
        %626 = vmatpush1.msra.mxu0 %v360
        %627 = vmatprep.subr.mxu0 0.0
        %628 = vmatpush1.msra.mxu0 %v361
        %629 = vmatprep.subr.mxu0 0.0
        %630 = vmatpush1.msra.mxu0 %v362
        %631 = vmatprep.subr.mxu0 0.0
        %632 = vmatpush1.msra.mxu0 %v363
        %633 = vmatprep.subr.mxu0 0.0
        %634 = vmatpush1.msra.mxu0 %v364
        %635 = vmatprep.subr.mxu0 0.0
        %636 = vmatpush1.msra.mxu0 %v365
        %637 = vmatprep.subr.mxu0 0.0
        %638 = vmatpush1.msra.mxu0 %v366
        %639 = vmatprep.subr.mxu0 0.0
        %640 = vmatpush1.msra.mxu0 %v367
        %641 = vmatprep.subr.mxu0 0.0
        %642 = vmatpush1.msra.mxu0 0.0
        %643 = vmatprep.subr.mxu0 0.0
        %644 = vmatpush1.msra.mxu0 0.0
        %645 = vmatprep.subr.mxu0 0.0
        %646 = vmatpush1.msra.mxu0 0.0
        %647 = vmatprep.subr.mxu0 0.0
        %648 = vmatpush1.msra.mxu0 0.0
        %649 = vmatprep.subr.mxu0 0.0
        %650 = vmatpush1.msra.mxu0 0.0
        %651 = vmatprep.subr.mxu0 0.0
        %652 = vmatpush1.msra.mxu0 0.0
        %653 = vmatprep.subr.mxu0 0.0
        %654 = vmatpush1.msra.mxu0 0.0
        %655 = vmatprep.subr.mxu0 0.0
        %656 = vmatpush1.msra.mxu0 0.0
        %657 = vmatprep.subr.mxu0 0.0
        %658 = vmatpush1.msra.mxu0 0.0
        %659 = vmatprep.subr.mxu0 0.0
        %660 = vmatpush1.msra.mxu0 0.0
        %661 = vmatprep.subr.mxu0 0.0
        %662 = vmatpush1.msra.mxu0 0.0
        %663 = vmatprep.subr.mxu0 0.0
        %664 = vmatpush1.msra.mxu0 0.0
        %665 = vmatprep.subr.mxu0 0.0
        %666 = vmatpush1.msra.mxu0 0.0
        %667 = vmatprep.subr.mxu0 0.0
        %668 = vmatpush1.msra.mxu0 0.0
        %669 = vmatprep.subr.mxu0 0.0
        %670 = vmatpush1.msra.mxu0 0.0
        %671 = vmatprep.subr.mxu0 0.0
        %672 = vmatpush1.msra.mxu0 0.0
        %673 = vmatprep.mubr.f32.mxu0 0.0
        %674 = vmatmul.mubr.f32.gmra.mrb[0].mxu0 %v538
        %v675 = vpop.f32.mrb[0].mxu0
        %v676 = vadd.f32 0.0, %v675
        %v677 = vpop.f32.mrb[0].mxu0
        %678 = vdwg.mxu0
        %679 = vst [vmem:[%s317] sm:$0xff] %v606
        %680 = vst [vmem:[%s317 + $0x8] sm:$0xff] %v676
        %681 = vst [vmem:[%s324] sm:$0xff] %v537
        %682 = vst [vmem:[%s324 + $0x8] sm:$0xff] %v538
        %s683 = sand.u32 %s130, 1
        %s684 = scalar_lea.sflag [#allocation4], %s683
        %s685 = sand.u32 %s130, 1
        %s686 = smul.addr %s685, 16
        %s687 = scalar_lea.vmem [#allocation8], %s686
        %s688 = sand.u32 %s158, 1
        %s689 = scalar_lea.sflag [#allocation10], %s688
        %s690 = sand.u32 %s158, 1
        %s691 = smul.addr %s690, 16
        %s692 = scalar_lea.vmem [#allocation9], %s691
        // Predicated region
        $region45: #{tpu_custom_call.1} parent=31 // pred_check
          %p693 = pneg %p140
        $region46: #{tpu_custom_call.1} parent=31 // pred_check_branch
          %695 = sbr.rel (%p693) target = $region48
        $region47: #{tpu_custom_call.1} parent=31 // pred_region
          %s696 = smul.u32 2, %s32
          %s698 = ssub.s32 256, 256
          %699 = vsyncadd %s684, %s698
          %s700 = sadd.s32 %s33, %s696
          %s701 = smul.addr %s700, 128
          %s702 = scalar_lea.hbm %s3, %s701
          %s703 = sshll.u32 %s687, 4
          %s704 = int_to_ptr.vmem [resolvable:$true] %s703
          %709 = dma.vmem_to_hbm [thread:$0]  %s704, 256, %s702, %s684, 128, 128, 8
        $region48: #{tpu_custom_call.1} parent=31 // pred_fallthru
          _
        // Predicated region
        $region49: #{tpu_custom_call.1} parent=31 // pred_check
          %p710 = pneg %p168
        $region50: #{tpu_custom_call.1} parent=31 // pred_check_branch
          %712 = sbr.rel (%p710) target = $region52
        $region51: #{tpu_custom_call.1} parent=31 // pred_region
          %s713 = smul.u32 2, %s32
          %s715 = ssub.s32 256, 256
          %716 = vsyncadd %s689, %s715
          %s717 = sadd.s32 %s33, %s713
          %s718 = smul.addr %s717, 128
          %s719 = scalar_lea.hbm %s4, %s718
          %s720 = sshll.u32 %s692, 4
          %s721 = int_to_ptr.vmem [resolvable:$true] %s720
          %726 = dma.vmem_to_hbm [thread:$0]  %s721, 256, %s719, %s689, 128, 128, 8
        $region52: #{tpu_custom_call.1} parent=31 // pred_fallthru
          _
      $region32: #{tpu_custom_call.1} parent=5 // pred_fallthru
        _
      %p727 = scmp.le.s32.totalorder 2, %s23
      // Predicated region
      $region53: #{tpu_custom_call.1} parent=5 // pred_check
        %p728 = pneg %p727
      $region54: #{tpu_custom_call.1} parent=5 // pred_check_branch
        %730 = sbr.rel (%p728) target = $region56
      $region55: #{tpu_custom_call.1} parent=5 // pred_region
        %s731 = ssub.s32 %s23, 2
        // Predicated region
        $region57: #{tpu_custom_call.1} parent=55 // pred_check
          %p732 = pneg %p146
        $region58: #{tpu_custom_call.1} parent=55 // pred_check_branch
          %734 = sbr.rel (%p732) target = $region60
        $region59: #{tpu_custom_call.1} parent=55 // pred_region
          %s735 = sand.u32 %s131, 1
          %s736 = scalar_lea.sflag [#allocation4], %s735
          %s737 = sand.u32 %s131, 1
          %s738 = smul.addr %s737, 16
          %s739 = scalar_lea.vmem [#allocation8], %s738
          %740 = dma.done %s736, 256
        $region60: #{tpu_custom_call.1} parent=55 // pred_fallthru
          _
        // Predicated region
        $region61: #{tpu_custom_call.1} parent=55 // pred_check
          %p741 = pneg %p174
        $region62: #{tpu_custom_call.1} parent=55 // pred_check_branch
          %743 = sbr.rel (%p741) target = $region64
        $region63: #{tpu_custom_call.1} parent=55 // pred_region
          %s744 = sand.u32 %s159, 1
          %s745 = scalar_lea.sflag [#allocation10], %s744
          %s746 = sand.u32 %s159, 1
          %s747 = smul.addr %s746, 16
          %s748 = scalar_lea.vmem [#allocation9], %s747
          %749 = dma.done %s745, 256
        $region64: #{tpu_custom_call.1} parent=55 // pred_fallthru
          _
      $region56: #{tpu_custom_call.1} parent=5 // pred_fallthru
        _
    $region6: #{tpu_custom_call.1} parent=1 // loop_footer
      %s27 = sadd.s32 1, %s23
    $region7: #{tpu_custom_call.1} parent=1 // loop_footer_branch
      %22 = sbr.rel target = $region3
    $region8: #{tpu_custom_call.1} parent=1 // loop_exit
      _
    %750 = vsyncpa [#allocation3], 1
    %s751 = scalar_lea.sflag [#allocation3], 1
    %752 = vsyncpa %s751, 1
    %753 = vsyncpa [#allocation6], 1
    %s754 = scalar_lea.sflag [#allocation6], 1
    %755 = vsyncpa %s754, 1
    %756 = vsyncpa [#allocation4], 1
    %s757 = scalar_lea.sflag [#allocation4], 1
    %758 = vsyncpa %s757, 1
    %759 = vsyncpa [#allocation10], 1
    %s760 = scalar_lea.sflag [#allocation10], 1
    %761 = vsyncpa %s760, 1

</llo_original>
